<compile_context>
chip_gen: v5e
topology: v5e:2x2
jax: 0.10.0
libtpu: 0.0.40
codegen_flags: <defaults>
</compile_context>

<pallas_src>
import math

import jax
import jax.numpy as jnp
import numpy as np
from jax import lax
from jax.experimental import pallas as pl
from jax.experimental.pallas import tpu as pltpu

# ----------------------------- module config --------------------------------
INPLANES = 32          # must equal PLANES for the residual add
PLANES = 32
KSIZE = 3
DILATION = 2
SCALE = 4
WIDTH = int(math.floor(PLANES / SCALE))     # 8
NUMS = SCALE - 1                            # 3
PAD = (KSIZE // 2) * DILATION               # 2
WS = WIDTH * SCALE                          # 32
SE_BOTTLENECK = 128
BN_EPS = 1e-5

B = 2
T = 32

# ------------------- packed per-channel vector slab layout -------------------
# All (C, 1) bias / BN-scale / BN-offset vectors are concatenated along the
# sublane axis into one (VEC_TOTAL, 1) operand.  Every offset is a multiple of
# 8, so in-kernel static slices stay sublane-tile aligned.
_VEC_FIELDS = (
    ("conv1_b", WS), ("bn1_s", WS), ("bn1_o", WS),
    ("convs_b", NUMS * WIDTH), ("bns_s", NUMS * WIDTH), ("bns_o", NUMS * WIDTH),
    ("conv3_b", PLANES), ("bn3_s", PLANES), ("bn3_o", PLANES),
    ("se_b1", SE_BOTTLENECK), ("se_b2", PLANES),
)
VEC_OFF = {}
_off = 0
for _name, _n in _VEC_FIELDS:
    VEC_OFF[_name] = _off
    _off += _n
VEC_TOTAL = _off

# ------------------------ packed matrix slab layout --------------------------
WSLAB_COLS = max(INPLANES, WS, PLANES, KSIZE * WIDTH)            # 32
W_OFF = {
    "conv1": 0,
    "conv3": WS,
    "se1": WS + PLANES,
    "wtaps": WS + PLANES + SE_BOTTLENECK,
}
W_ROWS = WS + PLANES + SE_BOTTLENECK + NUMS * WIDTH              # 216


# ------------------- pltpu.roll convention probe (one-off) -------------------
_ROLL_SIGN_CACHE = []


def _probe_roll_sign():
    """Return +1 if pltpu.roll matches np.roll, -1 if it is the opposite
    rotation, or None if roll is unusable (falls back to concat shifts)."""
    try:
        def probe(x_ref, o_ref):
            o_ref[...] = pltpu.roll(x_ref[...], 1, axis=1)

        x = jnp.tile(jnp.arange(128, dtype=jnp.float32)[None, :], (8, 1))
        vspec = pl.BlockSpec(memory_space=pltpu.MemorySpace.VMEM)
        out = pl.pallas_call(
            probe,
            out_shape=jax.ShapeDtypeStruct((8, 128), jnp.float32),
            in_specs=[vspec], out_specs=vspec,
        )(x)
        out = np.asarray(jax.block_until_ready(out))
        xn = np.asarray(x)
        if np.array_equal(out, np.roll(xn, 1, axis=1)):
            return 1
        if np.array_equal(out, np.roll(xn, -1, axis=1)):
            return -1
    except Exception:
        pass
    return None


def _roll_sign():
    if not _ROLL_SIGN_CACHE:
        _ROLL_SIGN_CACHE.append(_probe_roll_sign())
    return _ROLL_SIGN_CACHE[0]


# ------------------------------- kernel -------------------------------------
def _make_kernel(Tn, Tp, roll_sign):
    offs = tuple(j * DILATION - PAD for j in range(KSIZE))   # e.g. (-2, 0, +2)

    def kernel(x_ref, w_ref, sew2_ref, vecs_ref, out_ref):
        # x_ref: (INPLANES, Tp) for one sample; out_ref: (PLANES, Tp)

        def vrow(name, n, i=0):
            off = VEC_OFF[name] + i * n
            return vecs_ref[off:off + n, :]                  # (n, 1)

        def wmat(name, rows, cols):
            off = W_OFF[name]
            return w_ref[off:off + rows, :cols]

        x = x_ref[...]                                       # (INPLANES, Tp)

        # --- conv1 (1x1) -> ReLU -> BN1 -----------------------------------
        y = jnp.dot(wmat("conv1", WS, INPLANES), x,
                    preferred_element_type=jnp.float32)
        y = jnp.maximum(y + vrow("conv1_b", WS), 0.0)
        y = y * vrow("bn1_s", WS) + vrow("bn1_o", WS)        # (WS, Tp)

        # --- per-lane time index + tap validity masks ----------------------
        # Valid time positions are t < Tn; lanes [Tn, Tp) are padding and the
        # masks guarantee they never contaminate valid lanes.
        t_idx = lax.broadcasted_iota(jnp.int32, (1, Tp), 1)
        tap_mask = {}
        for off in offs:
            if off < 0:
                tap_mask[off] = t_idx >= -off
            elif off > 0:
                tap_mask[off] = t_idx < (Tn - off)

        def shifted_tap(sp, off):
            # want: tap[:, t] == sp[:, t + off]  (zero where t+off out of range)
            if off == 0:
                return sp
            if roll_sign is not None:
                rolled = pltpu.roll(sp, (roll_sign * -off) % Tp, axis=1)
            else:
                # Concat-based fallback (always correct, slightly more VPU/ld-st).
                if off < 0:
                    rolled = jnp.concatenate(
                        [jnp.zeros((WIDTH, -off), jnp.float32),
                         sp[:, :Tp + off]], axis=1)
                else:
                    rolled = jnp.concatenate(
                        [sp[:, off:],
                         jnp.zeros((WIDTH, off), jnp.float32)], axis=1)
            return jnp.where(tap_mask[off], rolled, 0.0)

        # --- Res2Net branches ----------------------------------------------
        splits = []
        sp = None
        for i in range(NUMS):
            xi = y[i * WIDTH:(i + 1) * WIDTH, :]
            sp = xi if i == 0 else sp + xi                   # (WIDTH, Tp)

            # fused (WIDTH x K*WIDTH) tap matmul: one MXU push per branch
            tap_stack = jnp.concatenate(
                [shifted_tap(sp, off) for off in offs], axis=0)   # (K*WIDTH, Tp)
            w_i = w_ref[W_OFF["wtaps"] + i * WIDTH:
                        W_OFF["wtaps"] + (i + 1) * WIDTH, :KSIZE * WIDTH]
            acc = jnp.dot(w_i, tap_stack, preferred_element_type=jnp.float32)
            acc = jnp.maximum(acc + vrow("convs_b", WIDTH, i), 0.0)   # ReLU
            sp = acc * vrow("bns_s", WIDTH, i) + vrow("bns_o", WIDTH, i)
            splits.append(sp)
        splits.append(y[NUMS * WIDTH:, :])                   # pass-through split

        # --- conv3 as ONE (PLANES, WS) @ (WS, Tp) GEMM ----------------------
        stacked = jnp.concatenate(splits, axis=0)            # (WS, Tp)
        z = jnp.dot(wmat("conv3", PLANES, WS), stacked,
                    preferred_element_type=jnp.float32)
        z = jnp.maximum(z + vrow("conv3_b", PLANES), 0.0)
        z = z * vrow("bn3_s", PLANES) + vrow("bn3_o", PLANES)   # (PLANES, Tp)

        # --- SE module (per-sample) -----------------------------------------
        # mean pool over the Tn valid lanes only (pad lanes excluded)
        pool_col = jnp.where(
            lax.broadcasted_iota(jnp.int32, (Tp, 1), 0) < Tn, 1.0 / Tn, 0.0)
        pooled = jnp.dot(z, pool_col,
                         preferred_element_type=jnp.float32)     # (PLANES, 1)

        s = jnp.dot(wmat("se1", SE_BOTTLENECK, PLANES), pooled,
                    preferred_element_type=jnp.float32)
        s = jnp.maximum(s + vrow("se_b1", SE_BOTTLENECK), 0.0)
        g = jnp.dot(sew2_ref[...], s, preferred_element_type=jnp.float32)
        g = g + vrow("se_b2", PLANES)
        # exact sigmoid; approx=True is fine in production with looser tolerance
        g = pl.reciprocal(1.0 + jnp.exp(-g), approx=False)        # (PLANES, 1)

        # --- SE gate (VPU broadcast over lanes) + residual -------------------
        out_ref[...] = z * g + x

    return kernel


# ------------------------------ wrapper --------------------------------------
def bottle2neck_forward(x, P):
    Bn, Cn, Tn = x.shape
    assert Cn == INPLANES, "input channel count must equal inplanes"
    assert INPLANES == PLANES, "residual add requires inplanes == planes"

    # lane-dense per-sample time axis (multiple of 128)
    Tp = max(128, ((Tn + 127) // 128) * 128)
    # TODO(synk): for very long T, add a second (time-tile) grid axis with a
    # PAD-wide halo instead of keeping a whole sample resident per step.
    x_pad = jnp.pad(x, ((0, 0), (0, 0), (0, Tp - Tn)))            # (B, C, Tp)

    # ---- host-side operand packing (pure layout, no math) ----
    def padcols(m):
        return jnp.pad(m, ((0, 0), (0, WSLAB_COLS - m.shape[1])))

    wtaps = jnp.transpose(P["convs_w"], (0, 2, 1, 3)).reshape(
        NUMS, WIDTH, KSIZE * WIDTH)                               # (NUMS, 8, 24)
    wslab = jnp.concatenate([
        padcols(P["conv1_w"]),                                    # rows [0, 32)
        padcols(P["conv3_w"]),                                    # rows [32, 64)
        padcols(P["se_w1"]),                                      # rows [64, 192)
        padcols(wtaps.reshape(NUMS * WIDTH, KSIZE * WIDTH)),      # rows [192, 216)
    ], axis=0)                                                    # (216, 32)

    vecs = jnp.concatenate([
        P["conv1_b"], P["bn1_s"], P["bn1_o"],
        P["convs_b"].reshape(NUMS * WIDTH, 1),
        P["bns_s"].reshape(NUMS * WIDTH, 1),
        P["bns_o"].reshape(NUMS * WIDTH, 1),
        P["conv3_b"], P["bn3_s"], P["bn3_o"],
        P["se_b1"], P["se_b2"],
    ], axis=0)                                                    # (VEC_TOTAL, 1)

    # NOTE: for production, cast x_pad / wslab / se_w2 to bfloat16 here (keep
    # preferred_element_type=f32) to cut MXU cycles ~3x on v6e/v7x; left in f32
    # so the 1e-4 check against the f32 reference below stays tight.

    kern = _make_kernel(Tn, Tp, _roll_sign())
    out = pl.pallas_call(
        kern,
        out_shape=jax.ShapeDtypeStruct((Bn, PLANES, Tp), jnp.float32),
        grid=(Bn,),
        in_specs=[
            pl.BlockSpec((None, Cn, Tp), lambda b: (b, 0, 0)),    # one sample
            pl.BlockSpec(wslab.shape, lambda b: (0, 0)),          # weight slab
            pl.BlockSpec(P["se_w2"].shape, lambda b: (0, 0)),     # (32, 128)
            pl.BlockSpec(vecs.shape, lambda b: (0, 0)),           # vector slab
        ],
        out_specs=pl.BlockSpec((None, PLANES, Tp), lambda b: (b, 0, 0)),
        compiler_params=pltpu.CompilerParams(
            dimension_semantics=("parallel",)),
    )(x_pad, wslab, P["se_w2"], vecs)

    return out[:, :, :Tn]


# ----------------------- deterministic parameter init ------------------------
def make_params(key):
    ks = jax.random.split(key, 24)
    f32 = jnp.float32

    def u(k, shape, lo=-0.3, hi=0.3):
        return jax.random.uniform(k, shape, f32, lo, hi)

    def bn(kg, kb, km, kv, c):
        gamma = jax.random.uniform(kg, (c, 1), f32, 0.5, 1.5)
        beta = u(kb, (c, 1))
        mean = u(km, (c, 1))
        var = jax.random.uniform(kv, (c, 1), f32, 0.5, 1.5)
        scale = gamma / jnp.sqrt(var + BN_EPS)
        offset = beta - mean * scale
        return scale, offset

    P = {}
    P["conv1_w"] = u(ks[0], (WS, INPLANES))
    P["conv1_b"] = u(ks[1], (WS, 1))
    P["bn1_s"], P["bn1_o"] = bn(ks[2], ks[3], ks[4], ks[5], WS)

    # stored as (NUMS, KSIZE, WIDTH_out, WIDTH_in) == torch W[:, :, j] per tap
    P["convs_w"] = u(ks[6], (NUMS, KSIZE, WIDTH, WIDTH))
    P["convs_b"] = u(ks[7], (NUMS, WIDTH, 1))
    bs, bo = [], []
    for i in range(NUMS):
        kk = jax.random.split(ks[8 + i], 4)
        s_, o_ = bn(kk[0], kk[1], kk[2], kk[3], WIDTH)
        bs.append(s_)
        bo.append(o_)
    P["bns_s"] = jnp.stack(bs)           # (NUMS, WIDTH, 1)
    P["bns_o"] = jnp.stack(bo)

    P["conv3_w"] = u(ks[11], (PLANES, WS))
    P["conv3_b"] = u(ks[12], (PLANES, 1))
    P["bn3_s"], P["bn3_o"] = bn(ks[13], ks[14], ks[15], ks[16], PLANES)

    P["se_w1"] = u(ks[17], (SE_BOTTLENECK, PLANES))
    P["se_b1"] = u(ks[18], (SE_BOTTLENECK, 1))
    P["se_w2"] = u(ks[19], (PLANES, SE_BOTTLENECK))
    P["se_b2"] = u(ks[20], (PLANES, 1))
    return P


# --------------------------- pure-JAX reference -------------------------------
def ref_forward(x, P):
    Tn = x.shape[-1]
    relu = lambda a: jnp.maximum(a, 0.0)

    def c1x1(h, w, b):
        return jnp.einsum("oi,bit->bot", w, h) + b[None]

    y = relu(c1x1(x, P["conv1_w"], P["conv1_b"]))
    y = y * P["bn1_s"][None] + P["bn1_o"][None]

    outs = []
    sp = None
    for i in range(NUMS):
        xi = y[:, i * WIDTH:(i + 1) * WIDTH, :]
        sp = xi if i == 0 else sp + xi
        spp = jnp.pad(sp, ((0, 0), (0, 0), (PAD, PAD)))
        acc = jnp.zeros_like(sp)
        for j in range(KSIZE):
            acc = acc + jnp.einsum(
                "oi,bit->bot", P["convs_w"][i, j],
                spp[:, :, j * DILATION: j * DILATION + Tn])
        acc = acc + P["convs_b"][i][None]
        sp = relu(acc)
        sp = sp * P["bns_s"][i][None] + P["bns_o"][i][None]
        outs.append(sp)
    outs.append(y[:, NUMS * WIDTH:, :])
    z = jnp.concatenate(outs, axis=1)

    z = relu(c1x1(z, P["conv3_w"], P["conv3_b"]))
    z = z * P["bn3_s"][None] + P["bn3_o"][None]

    pooled = jnp.mean(z, axis=-1, keepdims=True)
    s = relu(jnp.einsum("oi,bit->bot", P["se_w1"], pooled) + P["se_b1"][None])
    g = jax.nn.sigmoid(
        jnp.einsum("oi,bit->bot", P["se_w2"], s) + P["se_b2"][None])
    return z * g + x


# --------------------------------- main ---------------------------------------
if __name__ == "__main__":
    key = jax.random.PRNGKey(0)
    kx, kp = jax.random.split(key)
    x = jax.random.normal(kx, (B, INPLANES, T), jnp.float32)
    P = make_params(kp)

    out = jax.block_until_ready(bottle2neck_forward(x, P))
    ref = jax.block_until_ready(ref_forward(x, P))
    np.testing.assert_allclose(np.asarray(out), np.asarray(ref),
                               rtol=1e-4, atol=1e-4)
    print("KERNEL_OK")
</pallas_src>

<mosaic_0001>
module attributes {stable_mosaic.version = 11 : i64} {
  func.func @probe(%arg0: memref<8x128xf32, #tpu.memory_space<vmem>>, %arg1: memref<8x128xf32, #tpu.memory_space<vmem>>) attributes {dimension_semantics = [], scalar_prefetch = 0 : i64, scratch_operands = 0 : i64, tpu.core_type = #tpu.core_type<tc>} {
    %c0 = arith.constant 0 : index
    %c0_0 = arith.constant 0 : index
    %0 = vector.load %arg0[%c0, %c0_0] : memref<8x128xf32, #tpu.memory_space<vmem>>, vector<8x128xf32>
    %c1_i32 = arith.constant 1 : i32
    %1 = tpu.dynamic_rotate %0 by %c1_i32 dim 1 : vector<8x128xf32>, i32 -> vector<8x128xf32>
    %c0_1 = arith.constant 0 : index
    %c0_2 = arith.constant 0 : index
    %2 = vector.load %arg1[%c0_1, %c0_2] : memref<8x128xf32, #tpu.memory_space<vmem>>, vector<8x128xf32>
    tpu.vector_store %arg1[%c0_1, %c0_2], %1 {strides = array<i32>} : memref<8x128xf32, #tpu.memory_space<vmem>>, vector<8x128xf32>,
    return
  }
}

module attributes {stable_mosaic.version = 11 : i64} {
  func.func @kernel(%arg0: i32, %arg1: memref<1x32x128xf32, #tpu.memory_space<vmem>>, %arg2: memref<216x32xf32, #tpu.memory_space<vmem>>, %arg3: memref<32x128xf32, #tpu.memory_space<vmem>>, %arg4: memref<424x1xf32, #tpu.memory_space<vmem>>, %arg5: memref<1x32x128xf32, #tpu.memory_space<vmem>>) attributes {dimension_semantics = [#tpu.dimension_semantics<parallel>], iteration_bounds = array<i64: 2>, scalar_prefetch = 0 : i64, scratch_operands = 0 : i64, tpu.core_type = #tpu.core_type<tc>, window_params = [{transform_indices = @transform_0, window_bounds = array<i64: 1, 32, 128>}, {pipeline_mode = #tpu.pipeline_mode<synchronous>, transform_indices = @transform_1, window_bounds = array<i64: 216, 32>}, {pipeline_mode = #tpu.pipeline_mode<synchronous>, transform_indices = @transform_2, window_bounds = array<i64: 32, 128>}, {pipeline_mode = #tpu.pipeline_mode<synchronous>, transform_indices = @transform_3, window_bounds = array<i64: 424, 1>}, {transform_indices = @transform_4, window_bounds = array<i64: 1, 32, 128>}]} {
    %c0 = arith.constant 0 : index
    %c0_0 = arith.constant 0 : index
    %c0_1 = arith.constant 0 : index
    %0 = vector.load %arg1[%c0, %c0_0, %c0_1] : memref<1x32x128xf32, #tpu.memory_space<vmem>>, vector<1x32x128xf32>
    %1 = vector.shape_cast %0 : vector<1x32x128xf32> to vector<32x128xf32>
    %c0_2 = arith.constant 0 : index
    %c0_3 = arith.constant 0 : index
    %2 = vector.load %arg2[%c0_2, %c0_3] : memref<216x32xf32, #tpu.memory_space<vmem>>, vector<32x32xf32>
    %cst = arith.constant dense<0.000000e+00> : vector<32x128xf32>
    %3 = tpu.matmul %2, %1, %cst {dimension_numbers = #tpu.dot_dimension_numbers<[1], [0], [0], [1], [0, 0, 1, 1], [], []>} : vector<32x32xf32>, vector<32x128xf32>, vector<32x128xf32> -> vector<32x128xf32>
    %c0_4 = arith.constant 0 : index
    %c0_5 = arith.constant 0 : index
    %4 = vector.load %arg4[%c0_4, %c0_5] : memref<424x1xf32, #tpu.memory_space<vmem>>, vector<32x1xf32>
    %5 = vector.broadcast %4 : vector<32x1xf32> to vector<32x128xf32>
    %6 = arith.addf %3, %5 : vector<32x128xf32>
    %cst_6 = arith.constant 0.000000e+00 : f32
    %7 = vector.broadcast %cst_6 : f32 to vector<32x128xf32>
    %8 = arith.maximumf %6, %7 : vector<32x128xf32>
    %c32 = arith.constant 32 : index
    %c0_7 = arith.constant 0 : index
    %9 = vector.load %arg4[%c32, %c0_7] : memref<424x1xf32, #tpu.memory_space<vmem>>, vector<32x1xf32>
    %10 = vector.broadcast %9 : vector<32x1xf32> to vector<32x128xf32>
    %11 = arith.mulf %8, %10 : vector<32x128xf32>
    %c64 = arith.constant 64 : index
    %c0_8 = arith.constant 0 : index
    %12 = vector.load %arg4[%c64, %c0_8] : memref<424x1xf32, #tpu.memory_space<vmem>>, vector<32x1xf32>
    %13 = vector.broadcast %12 : vector<32x1xf32> to vector<32x128xf32>
    %14 = arith.addf %11, %13 : vector<32x128xf32>
    %15 = tpu.iota {dimensions = array<i32: 1>} : vector<1x128xi32>
    %c2_i32 = arith.constant 2 : i32
    %16 = vector.broadcast %c2_i32 : i32 to vector<1x128xi32>
    %17 = arith.cmpi sge, %15, %16 : vector<1x128xi32>
    %c30_i32 = arith.constant 30 : i32
    %18 = vector.broadcast %c30_i32 : i32 to vector<1x128xi32>
    %19 = arith.cmpi slt, %15, %18 : vector<1x128xi32>
    %20 = vector.extract_strided_slice %14 {offsets = [0, 0], sizes = [8, 128], strides = [1, 1]} : vector<32x128xf32> to vector<8x128xf32>
    %cst_9 = arith.constant 0.000000e+00 : f32
    %21 = vector.broadcast %cst_9 : f32 to vector<8x2xf32>
    %22 = vector.extract_strided_slice %20 {offsets = [0, 0], sizes = [8, 126], strides = [1, 1]} : vector<8x128xf32> to vector<8x126xf32>
    %23 = tpu.concatenate %21, %22 in 1 : vector<8x2xf32>, vector<8x126xf32> -> vector<8x128xf32>
    %cst_10 = arith.constant 0.000000e+00 : f32
    %24 = vector.shape_cast %17 : vector<1x128xi1> to vector<1x128xi1>
    %25 = vector.broadcast %24 : vector<1x128xi1> to vector<8x128xi1>
    %26 = vector.broadcast %cst_10 : f32 to vector<8x128xf32>
    %27 = arith.select %25, %23, %26 : vector<8x128xi1>, vector<8x128xf32>
    %28 = vector.extract_strided_slice %20 {offsets = [0, 2], sizes = [8, 126], strides = [1, 1]} : vector<8x128xf32> to vector<8x126xf32>
    %cst_11 = arith.constant 0.000000e+00 : f32
    %29 = vector.broadcast %cst_11 : f32 to vector<8x2xf32>
    %30 = tpu.concatenate %28, %29 in 1 : vector<8x126xf32>, vector<8x2xf32> -> vector<8x128xf32>
    %cst_12 = arith.constant 0.000000e+00 : f32
    %31 = vector.shape_cast %19 : vector<1x128xi1> to vector<1x128xi1>
    %32 = vector.broadcast %31 : vector<1x128xi1> to vector<8x128xi1>
    %33 = vector.broadcast %cst_12 : f32 to vector<8x128xf32>
    %34 = arith.select %32, %30, %33 : vector<8x128xi1>, vector<8x128xf32>
    %35 = tpu.concatenate %27, %20, %34 in 0 : vector<8x128xf32>, vector<8x128xf32>, vector<8x128xf32> -> vector<24x128xf32>
    %c192 = arith.constant 192 : index
    %c0_13 = arith.constant 0 : index
    %36 = vector.load %arg2[%c192, %c0_13] : memref<216x32xf32, #tpu.memory_space<vmem>>, vector<8x24xf32>
    %cst_14 = arith.constant dense<0.000000e+00> : vector<8x128xf32>
    %37 = tpu.matmul %36, %35, %cst_14 {dimension_numbers = #tpu.dot_dimension_numbers<[1], [0], [0], [1], [0, 0, 1, 1], [], []>} : vector<8x24xf32>, vector<24x128xf32>, vector<8x128xf32> -> vector<8x128xf32>
    %c96 = arith.constant 96 : index
    %c0_15 = arith.constant 0 : index
    %38 = vector.load %arg4[%c96, %c0_15] : memref<424x1xf32, #tpu.memory_space<vmem>>, vector<8x1xf32>
    %39 = vector.broadcast %38 : vector<8x1xf32> to vector<8x128xf32>
    %40 = arith.addf %37, %39 : vector<8x128xf32>
    %cst_16 = arith.constant 0.000000e+00 : f32
    %41 = vector.broadcast %cst_16 : f32 to vector<8x128xf32>
    %42 = arith.maximumf %40, %41 : vector<8x128xf32>
    %c120 = arith.constant 120 : index
    %c0_17 = arith.constant 0 : index
    %43 = vector.load %arg4[%c120, %c0_17] : memref<424x1xf32, #tpu.memory_space<vmem>>, vector<8x1xf32>
    %44 = vector.broadcast %43 : vector<8x1xf32> to vector<8x128xf32>
    %45 = arith.mulf %42, %44 : vector<8x128xf32>
    %c144 = arith.constant 144 : index
    %c0_18 = arith.constant 0 : index
    %46 = vector.load %arg4[%c144, %c0_18] : memref<424x1xf32, #tpu.memory_space<vmem>>, vector<8x1xf32>
    %47 = vector.broadcast %46 : vector<8x1xf32> to vector<8x128xf32>
    %48 = arith.addf %45, %47 : vector<8x128xf32>
    %49 = vector.extract_strided_slice %14 {offsets = [8, 0], sizes = [8, 128], strides = [1, 1]} : vector<32x128xf32> to vector<8x128xf32>
    %50 = arith.addf %48, %49 : vector<8x128xf32>
    %cst_19 = arith.constant 0.000000e+00 : f32
    %51 = vector.broadcast %cst_19 : f32 to vector<8x2xf32>
    %52 = vector.extract_strided_slice %50 {offsets = [0, 0], sizes = [8, 126], strides = [1, 1]} : vector<8x128xf32> to vector<8x126xf32>
    %53 = tpu.concatenate %51, %52 in 1 : vector<8x2xf32>, vector<8x126xf32> -> vector<8x128xf32>
    %cst_20 = arith.constant 0.000000e+00 : f32
    %54 = vector.shape_cast %17 : vector<1x128xi1> to vector<1x128xi1>
    %55 = vector.broadcast %54 : vector<1x128xi1> to vector<8x128xi1>
    %56 = vector.broadcast %cst_20 : f32 to vector<8x128xf32>
    %57 = arith.select %55, %53, %56 : vector<8x128xi1>, vector<8x128xf32>
    %58 = vector.extract_strided_slice %50 {offsets = [0, 2], sizes = [8, 126], strides = [1, 1]} : vector<8x128xf32> to vector<8x126xf32>
    %cst_21 = arith.constant 0.000000e+00 : f32
    %59 = vector.broadcast %cst_21 : f32 to vector<8x2xf32>
    %60 = tpu.concatenate %58, %59 in 1 : vector<8x126xf32>, vector<8x2xf32> -> vector<8x128xf32>
    %cst_22 = arith.constant 0.000000e+00 : f32
    %61 = vector.shape_cast %19 : vector<1x128xi1> to vector<1x128xi1>
    %62 = vector.broadcast %61 : vector<1x128xi1> to vector<8x128xi1>
    %63 = vector.broadcast %cst_22 : f32 to vector<8x128xf32>
    %64 = arith.select %62, %60, %63 : vector<8x128xi1>, vector<8x128xf32>
    %65 = tpu.concatenate %57, %50, %64 in 0 : vector<8x128xf32>, vector<8x128xf32>, vector<8x128xf32> -> vector<24x128xf32>
    %c200 = arith.constant 200 : index
    %c0_23 = arith.constant 0 : index
    %66 = vector.load %arg2[%c200, %c0_23] : memref<216x32xf32, #tpu.memory_space<vmem>>, vector<8x24xf32>
    %cst_24 = arith.constant dense<0.000000e+00> : vector<8x128xf32>
    %67 = tpu.matmul %66, %65, %cst_24 {dimension_numbers = #tpu.dot_dimension_numbers<[1], [0], [0], [1], [0, 0, 1, 1], [], []>} : vector<8x24xf32>, vector<24x128xf32>, vector<8x128xf32> -> vector<8x128xf32>
    %c104 = arith.constant 104 : index
    %c0_25 = arith.constant 0 : index
    %68 = vector.load %arg4[%c104, %c0_25] : memref<424x1xf32, #tpu.memory_space<vmem>>, vector<8x1xf32>
    %69 = vector.broadcast %68 : vector<8x1xf32> to vector<8x128xf32>
    %70 = arith.addf %67, %69 : vector<8x128xf32>
    %cst_26 = arith.constant 0.000000e+00 : f32
    %71 = vector.broadcast %cst_26 : f32 to vector<8x128xf32>
    %72 = arith.maximumf %70, %71 : vector<8x128xf32>
    %c128 = arith.constant 128 : index
    %c0_27 = arith.constant 0 : index
    %73 = vector.load %arg4[%c128, %c0_27] : memref<424x1xf32, #tpu.memory_space<vmem>>, vector<8x1xf32>
    %74 = vector.broadcast %73 : vector<8x1xf32> to vector<8x128xf32>
    %75 = arith.mulf %72, %74 : vector<8x128xf32>
    %c152 = arith.constant 152 : index
    %c0_28 = arith.constant 0 : index
    %76 = vector.load %arg4[%c152, %c0_28] : memref<424x1xf32, #tpu.memory_space<vmem>>, vector<8x1xf32>
    %77 = vector.broadcast %76 : vector<8x1xf32> to vector<8x128xf32>
    %78 = arith.addf %75, %77 : vector<8x128xf32>
    %79 = vector.extract_strided_slice %14 {offsets = [16, 0], sizes = [8, 128], strides = [1, 1]} : vector<32x128xf32> to vector<8x128xf32>
    %80 = arith.addf %78, %79 : vector<8x128xf32>
    %cst_29 = arith.constant 0.000000e+00 : f32
    %81 = vector.broadcast %cst_29 : f32 to vector<8x2xf32>
    %82 = vector.extract_strided_slice %80 {offsets = [0, 0], sizes = [8, 126], strides = [1, 1]} : vector<8x128xf32> to vector<8x126xf32>
    %83 = tpu.concatenate %81, %82 in 1 : vector<8x2xf32>, vector<8x126xf32> -> vector<8x128xf32>
    %cst_30 = arith.constant 0.000000e+00 : f32
    %84 = vector.shape_cast %17 : vector<1x128xi1> to vector<1x128xi1>
    %85 = vector.broadcast %84 : vector<1x128xi1> to vector<8x128xi1>
    %86 = vector.broadcast %cst_30 : f32 to vector<8x128xf32>
    %87 = arith.select %85, %83, %86 : vector<8x128xi1>, vector<8x128xf32>
    %88 = vector.extract_strided_slice %80 {offsets = [0, 2], sizes = [8, 126], strides = [1, 1]} : vector<8x128xf32> to vector<8x126xf32>
    %cst_31 = arith.constant 0.000000e+00 : f32
    %89 = vector.broadcast %cst_31 : f32 to vector<8x2xf32>
    %90 = tpu.concatenate %88, %89 in 1 : vector<8x126xf32>, vector<8x2xf32> -> vector<8x128xf32>
    %cst_32 = arith.constant 0.000000e+00 : f32
    %91 = vector.shape_cast %19 : vector<1x128xi1> to vector<1x128xi1>
    %92 = vector.broadcast %91 : vector<1x128xi1> to vector<8x128xi1>
    %93 = vector.broadcast %cst_32 : f32 to vector<8x128xf32>
    %94 = arith.select %92, %90, %93 : vector<8x128xi1>, vector<8x128xf32>
    %95 = tpu.concatenate %87, %80, %94 in 0 : vector<8x128xf32>, vector<8x128xf32>, vector<8x128xf32> -> vector<24x128xf32>
    %c208 = arith.constant 208 : index
    %c0_33 = arith.constant 0 : index
    %96 = vector.load %arg2[%c208, %c0_33] : memref<216x32xf32, #tpu.memory_space<vmem>>, vector<8x24xf32>
    %cst_34 = arith.constant dense<0.000000e+00> : vector<8x128xf32>
    %97 = tpu.matmul %96, %95, %cst_34 {dimension_numbers = #tpu.dot_dimension_numbers<[1], [0], [0], [1], [0, 0, 1, 1], [], []>} : vector<8x24xf32>, vector<24x128xf32>, vector<8x128xf32> -> vector<8x128xf32>
    %c112 = arith.constant 112 : index
    %c0_35 = arith.constant 0 : index
    %98 = vector.load %arg4[%c112, %c0_35] : memref<424x1xf32, #tpu.memory_space<vmem>>, vector<8x1xf32>
    %99 = vector.broadcast %98 : vector<8x1xf32> to vector<8x128xf32>
    %100 = arith.addf %97, %99 : vector<8x128xf32>
    %cst_36 = arith.constant 0.000000e+00 : f32
    %101 = vector.broadcast %cst_36 : f32 to vector<8x128xf32>
    %102 = arith.maximumf %100, %101 : vector<8x128xf32>
    %c136 = arith.constant 136 : index
    %c0_37 = arith.constant 0 : index
    %103 = vector.load %arg4[%c136, %c0_37] : memref<424x1xf32, #tpu.memory_space<vmem>>, vector<8x1xf32>
    %104 = vector.broadcast %103 : vector<8x1xf32> to vector<8x128xf32>
    %105 = arith.mulf %102, %104 : vector<8x128xf32>
    %c160 = arith.constant 160 : index
    %c0_38 = arith.constant 0 : index
    %106 = vector.load %arg4[%c160, %c0_38] : memref<424x1xf32, #tpu.memory_space<vmem>>, vector<8x1xf32>
    %107 = vector.broadcast %106 : vector<8x1xf32> to vector<8x128xf32>
    %108 = arith.addf %105, %107 : vector<8x128xf32>
    %109 = vector.extract_strided_slice %14 {offsets = [24, 0], sizes = [8, 128], strides = [1, 1]} : vector<32x128xf32> to vector<8x128xf32>
    %110 = tpu.concatenate %48, %78, %108, %109 in 0 : vector<8x128xf32>, vector<8x128xf32>, vector<8x128xf32>, vector<8x128xf32> -> vector<32x128xf32>
    %c32_39 = arith.constant 32 : index
    %c0_40 = arith.constant 0 : index
    %111 = vector.load %arg2[%c32_39, %c0_40] : memref<216x32xf32, #tpu.memory_space<vmem>>, vector<32x32xf32>
    %cst_41 = arith.constant dense<0.000000e+00> : vector<32x128xf32>
    %112 = tpu.matmul %111, %110, %cst_41 {dimension_numbers = #tpu.dot_dimension_numbers<[1], [0], [0], [1], [0, 0, 1, 1], [], []>} : vector<32x32xf32>, vector<32x128xf32>, vector<32x128xf32> -> vector<32x128xf32>
    %c168 = arith.constant 168 : index
    %c0_42 = arith.constant 0 : index
    %113 = vector.load %arg4[%c168, %c0_42] : memref<424x1xf32, #tpu.memory_space<vmem>>, vector<32x1xf32>
    %114 = vector.broadcast %113 : vector<32x1xf32> to vector<32x128xf32>
    %115 = arith.addf %112, %114 : vector<32x128xf32>
    %cst_43 = arith.constant 0.000000e+00 : f32
    %116 = vector.broadcast %cst_43 : f32 to vector<32x128xf32>
    %117 = arith.maximumf %115, %116 : vector<32x128xf32>
    %c200_44 = arith.constant 200 : index
    %c0_45 = arith.constant 0 : index
    %118 = vector.load %arg4[%c200_44, %c0_45] : memref<424x1xf32, #tpu.memory_space<vmem>>, vector<32x1xf32>
    %119 = vector.broadcast %118 : vector<32x1xf32> to vector<32x128xf32>
    %120 = arith.mulf %117, %119 : vector<32x128xf32>
    %c232 = arith.constant 232 : index
    %c0_46 = arith.constant 0 : index
    %121 = vector.load %arg4[%c232, %c0_46] : memref<424x1xf32, #tpu.memory_space<vmem>>, vector<32x1xf32>
    %122 = vector.broadcast %121 : vector<32x1xf32> to vector<32x128xf32>
    %123 = arith.addf %120, %122 : vector<32x128xf32>
    %124 = tpu.iota {dimensions = array<i32: 0>} : vector<128x1xi32>
    %c32_i32 = arith.constant 32 : i32
    %125 = vector.broadcast %c32_i32 : i32 to vector<128x1xi32>
    %126 = arith.cmpi slt, %124, %125 : vector<128x1xi32>
    %cst_47 = arith.constant 3.125000e-02 : f32
    %cst_48 = arith.constant 0.000000e+00 : f32
    %127 = vector.broadcast %cst_47 : f32 to vector<128x1xf32>
    %128 = vector.broadcast %cst_48 : f32 to vector<128x1xf32>
    %129 = arith.select %126, %127, %128 : vector<128x1xi1>, vector<128x1xf32>
    %cst_49 = arith.constant dense<0.000000e+00> : vector<32x1xf32>
    %130 = tpu.matmul %123, %129, %cst_49 {dimension_numbers = #tpu.dot_dimension_numbers<[1], [0], [0], [1], [0, 0, 1, 1], [], []>} : vector<32x128xf32>, vector<128x1xf32>, vector<32x1xf32> -> vector<32x1xf32>
    %c64_50 = arith.constant 64 : index
    %c0_51 = arith.constant 0 : index
    %131 = vector.load %arg2[%c64_50, %c0_51] : memref<216x32xf32, #tpu.memory_space<vmem>>, vector<128x32xf32>
    %cst_52 = arith.constant dense<0.000000e+00> : vector<128x1xf32>
    %132 = tpu.matmul %131, %130, %cst_52 {dimension_numbers = #tpu.dot_dimension_numbers<[1], [0], [0], [1], [0, 0, 1, 1], [], []>} : vector<128x32xf32>, vector<32x1xf32>, vector<128x1xf32> -> vector<128x1xf32>
    %c264 = arith.constant 264 : index
    %c0_53 = arith.constant 0 : index
    %133 = vector.load %arg4[%c264, %c0_53] : memref<424x1xf32, #tpu.memory_space<vmem>>, vector<128x1xf32>
    %134 = arith.addf %132, %133 : vector<128x1xf32>
    %cst_54 = arith.constant 0.000000e+00 : f32
    %135 = vector.broadcast %cst_54 : f32 to vector<128x1xf32>
    %136 = arith.maximumf %134, %135 : vector<128x1xf32>
    %c0_55 = arith.constant 0 : index
    %c0_56 = arith.constant 0 : index
    %137 = vector.load %arg3[%c0_55, %c0_56] : memref<32x128xf32, #tpu.memory_space<vmem>>, vector<32x128xf32>
    %cst_57 = arith.constant dense<0.000000e+00> : vector<32x1xf32>
    %138 = tpu.matmul %137, %136, %cst_57 {dimension_numbers = #tpu.dot_dimension_numbers<[1], [0], [0], [1], [0, 0, 1, 1], [], []>} : vector<32x128xf32>, vector<128x1xf32>, vector<32x1xf32> -> vector<32x1xf32>
    %c392 = arith.constant 392 : index
    %c0_58 = arith.constant 0 : index
    %139 = vector.load %arg4[%c392, %c0_58] : memref<424x1xf32, #tpu.memory_space<vmem>>, vector<32x1xf32>
    %140 = arith.addf %138, %139 : vector<32x1xf32>
    %cst_59 = arith.constant 0.000000e+00 : f32
    %141 = vector.broadcast %cst_59 : f32 to vector<32x1xf32>
    %142 = arith.subf %141, %140 : vector<32x1xf32>
    %143 = math.exp %142 : vector<32x1xf32>
    %cst_60 = arith.constant 1.000000e+00 : f32
    %144 = vector.broadcast %cst_60 : f32 to vector<32x1xf32>
    %145 = arith.addf %144, %143 : vector<32x1xf32>
    %146 = tpu.reciprocal %145 : vector<32x1xf32> -> vector<32x1xf32>
    %147 = vector.broadcast %146 : vector<32x1xf32> to vector<32x128xf32>
    %148 = arith.mulf %123, %147 : vector<32x128xf32>
    %149 = arith.addf %148, %1 : vector<32x128xf32>
    %c0_61 = arith.constant 0 : index
    %c0_62 = arith.constant 0 : index
    %c0_63 = arith.constant 0 : index
    %150 = vector.load %arg5[%c0_61, %c0_62, %c0_63] : memref<1x32x128xf32, #tpu.memory_space<vmem>>, vector<1x32x128xf32>
    %151 = vector.shape_cast %150 : vector<1x32x128xf32> to vector<32x128xf32>
    %152 = vector.shape_cast %149 : vector<32x128xf32> to vector<1x32x128xf32>
    tpu.vector_store %arg5[%c0_61, %c0_62, %c0_63], %152 {strides = array<i32>} : memref<1x32x128xf32, #tpu.memory_space<vmem>>, vector<1x32x128xf32>,
    return
  }
  func.func @transform_0(%arg0: i32) -> (i32, i32, i32) {
    %c0_i32 = arith.constant 0 : i32
    %c0_i32_0 = arith.constant 0 : i32
    %c0_i32_1 = arith.constant 0 : i32
    return %arg0, %c0_i32, %c0_i32_0 : i32, i32, i32
  }
  func.func @transform_1(%arg0: i32) -> (i32, i32) {
    %c0_i32 = arith.constant 0 : i32
    %c0_i32_0 = arith.constant 0 : i32
    %c0_i32_1 = arith.constant 0 : i32
    return %c0_i32, %c0_i32_0 : i32, i32
  }
  func.func @transform_2(%arg0: i32) -> (i32, i32) {
    %c0_i32 = arith.constant 0 : i32
    %c0_i32_0 = arith.constant 0 : i32
    %c0_i32_1 = arith.constant 0 : i32
    return %c0_i32, %c0_i32_0 : i32, i32
  }
  func.func @transform_3(%arg0: i32) -> (i32, i32) {
    %c0_i32 = arith.constant 0 : i32
    %c0_i32_0 = arith.constant 0 : i32
    %c0_i32_1 = arith.constant 0 : i32
    return %c0_i32, %c0_i32_0 : i32, i32
  }
  func.func @transform_4(%arg0: i32) -> (i32, i32, i32) {
    %c0_i32 = arith.constant 0 : i32
    %c0_i32_0 = arith.constant 0 : i32
    %c0_i32_1 = arith.constant 0 : i32
    return %arg0, %c0_i32, %c0_i32_0 : i32, i32, i32
  }
}

</mosaic_0001>

<llo_original>
// kernel: tpu_custom_call.1
$region0: #{tpu_custom_call.1}
  #allocation0 [shape = 'u32[]', space=smem, size = 0x4, offset = 0x4, fixed_abs, tag = 'smem constant byte address 0x4 - core index']
  #allocation1 [shape = 'u32[72,128]{1,0:T(1,128)}', space=vmem, size = 0x9000, scoped, tag = 'internal scratch']
  %s0 = inlined_call_operand.hbm [shape: f32[8,128], index: 0, kind: input, shape index: {}]
  %s1 = inlined_call_operand.hbm [shape: f32[8,128], index: 1, kind: output, shape index: {}]
  %s2 = sld [smem:[#allocation0]]
  $region18: #{tpu_custom_call.1} parent=0
    _
  %s4 = ssub.s32 1, %s2
  %s5 = scalar_select 0, %s4, %s2
  $region1: #{tpu_custom_call.1} parent=0
    #allocation2 [shape = 'u8[4096]{0}', space=vmem, size = 0x1000, scoped, tag = 'input window, operand 0, single buffered']
    #allocation3 [shape = 's32[1]{0}', space=sflag, size = 0x4, scoped, tag = 'scoped memory for tpu_custom_call.1']
    #allocation4 [shape = 's32[1]{0}', space=sflag, size = 0x4, scoped, tag = 'scoped memory for tpu_custom_call.1']
    #allocation5 [shape = 'u8[4096]{0}', space=vmem, size = 0x1000, scoped, tag = 'output window, operand 0, single buffered']
    %6 = vsyncpa [#allocation3], 0
    %7 = vsyncpa [#allocation4], 0
    // Predicated region
    $region2: #{tpu_custom_call.1} parent=1 // pred_check
      _
    $region3: #{tpu_custom_call.1} parent=1 // pred_check_branch
      %9 = sbr.rel (0) target = $region5
    $region4: #{tpu_custom_call.1} parent=1 // pred_region
      %11 = vsyncadd [#allocation3], 0
      %s13 = sshll.u32 %s0, 4
      %s14 = int_to_ptr.hbm [resolvable:$true] %s13
      %s15 = sshll.u32 [#allocation2], 4
      %s16 = int_to_ptr.vmem [resolvable:$true] %s15
      %18 = dma.hbm_to_vmem [thread:$0]  %s14, 128, %s16, [#allocation3]
    $region5: #{tpu_custom_call.1} parent=1 // pred_fallthru
      _
    // Predicated region
    $region6: #{tpu_custom_call.1} parent=1 // pred_check
      _
    $region7: #{tpu_custom_call.1} parent=1 // pred_check_branch
      %20 = sbr.rel (0) target = $region9
    $region8: #{tpu_custom_call.1} parent=1 // pred_region
      %22 = dma.done [#allocation3], 128
    $region9: #{tpu_custom_call.1} parent=1 // pred_fallthru
      _
    %v23 = vld [vmem:[#allocation2] sm:$0xff]
    %24 = vrot.lane.b32.xlu0 %v23, 1
    %v25 = vpop.permute.xlu0 %24
    %26 = vst [vmem:[#allocation5] sm:$0xff] %v25
    // Predicated region
    $region10: #{tpu_custom_call.1} parent=1 // pred_check
      _
    $region11: #{tpu_custom_call.1} parent=1 // pred_check_branch
      %28 = sbr.rel (0) target = $region13
    $region12: #{tpu_custom_call.1} parent=1 // pred_region
      %30 = vsyncadd [#allocation4], 0
      %s32 = sshll.u32 [#allocation5], 4
      %s33 = int_to_ptr.vmem [resolvable:$true] %s32
      %s34 = sshll.u32 %s1, 4
      %s35 = int_to_ptr.hbm [resolvable:$true] %s34
      %37 = dma.vmem_to_hbm [thread:$0]  %s33, 128, %s35, [#allocation4]
    $region13: #{tpu_custom_call.1} parent=1 // pred_fallthru
      _
    // Predicated region
    $region14: #{tpu_custom_call.1} parent=1 // pred_check
      _
    $region15: #{tpu_custom_call.1} parent=1 // pred_check_branch
      %39 = sbr.rel (0) target = $region17
    $region16: #{tpu_custom_call.1} parent=1 // pred_region
      %41 = dma.done [#allocation4], 128
    $region17: #{tpu_custom_call.1} parent=1 // pred_fallthru
      _
    %42 = vsyncpa [#allocation3], 1
    %43 = vsyncpa [#allocation4], 1

// kernel: tpu_custom_call.1
$region0: #{tpu_custom_call.1}
  #allocation0 [shape = 'u32[]', space=smem, size = 0x4, offset = 0x4, fixed_abs, tag = 'smem constant byte address 0x4 - core index']
  #allocation1 [shape = 'u32[72,128]{1,0:T(1,128)}', space=vmem, size = 0x9000, scoped, tag = 'internal scratch']
  %s0 = inlined_call_operand.vmem [shape: f32[2,32,128], index: 0, kind: input, shape index: {}]
  %s1 = inlined_call_operand.vmem [shape: f32[216,32], index: 1, kind: input, shape index: {}]
  %s2 = inlined_call_operand.vmem [shape: f32[32,128], index: 2, kind: input, shape index: {}]
  %s3 = inlined_call_operand.vmem [shape: f32[424,1], index: 3, kind: input, shape index: {}]
  %s4 = inlined_call_operand.hbm [shape: f32[2,32,128], index: 4, kind: output, shape index: {}]
  %s5 = sld [smem:[#allocation0]]
  $region49: #{tpu_custom_call.1} parent=0
    _
  %s7 = ssub.s32 1, %s5
  %s8 = scalar_select 0, %s7, %s5
  $region1: #{tpu_custom_call.1} parent=0
    #allocation2 [shape = 'u8[32768]{0}', space=vmem, size = 0x8000, scoped, tag = 'output window, operand 0']
    #allocation3 [shape = 's32[2]{0}', space=sflag, size = 0x8, scoped, tag = 'scoped memory for tpu_custom_call.1']
    %9 = vsyncpa [#allocation3], 0
    %s10 = scalar_lea.sflag [#allocation3], 1
    %11 = vsyncpa %s10, 0
    loop: start=0, step=1, limit=4
    $region2: #{tpu_custom_call.1} parent=1 // loop_pre_header
      _
    $region3: #{tpu_custom_call.1} parent=1 // loop_header
      %s13 = sphi 0, %s17
      %p14 = scmp.ge.s32.totalorder %s13, 4
      %s23 = sphi 0, %s25
      %s26 = sphi 0, %s23
      %s27 = sphi 0, %s26
      %s43 = sphi 0, %s27
      %s47 = sphi 0, %s47
      %s49 = sphi 0, %s47
      %s50 = sphi 0, %s49
      %s64 = sphi 0, %s50
      %s68 = sphi 0, %s68
      %s70 = sphi 0, %s68
      %s71 = sphi 0, %s70
      %s85 = sphi 0, %s71
      %s89 = sphi 0, %s89
      %s91 = sphi 0, %s89
      %s92 = sphi 0, %s91
      %s106 = sphi 0, %s92
      %s112 = sphi 0, %s114
      %s115 = sphi 0, %s112
      %s116 = sphi 0, %s115
      %s132 = sphi 0, %s116
    $region4: #{tpu_custom_call.1} parent=1 // loop_header_branch
      %16 = sbr.rel (%p14) target = $region8
    $region5: #{tpu_custom_call.1} parent=1 // loop_body
      %s18 = ssub.s32 %s13, 1
      %s19 = ssub.s32 %s13, 2
      %s20 = sadd.s32 %s13, 1
      %s21 = ssub.s32 %s13, %s20
      %p22 = scmp.eq.s32.totalorder %s21, 0
      %s24 = sadd.s32 %s23, 1
      %s25 = scalar_select %p22, %s23, %s24
      %p28 = pneg %p22
      %p29 = scmp.eq.s32.totalorder %s13, 1
      %p30 = por %p28, %p29
      %p31 = scmp.ne.s32.totalorder %s23, %s26
      %p32 = scmp.eq.s32.totalorder %s13, 0
      %p33 = por %p31, %p32
      %p34 = scmp.ne.s32.totalorder %s23, %s26
      %p35 = scmp.eq.s32.totalorder %s18, 1
      %p36 = por %p34, %p35
      %p37 = scmp.ne.s32.totalorder %s26, %s27
      %p38 = scmp.eq.s32.totalorder %s18, 0
      %p39 = por %p37, %p38
      %p40 = scmp.ne.s32.totalorder %s26, %s27
      %p41 = scmp.eq.s32.totalorder %s19, 1
      %p42 = por %p40, %p41
      %p44 = scmp.ne.s32.totalorder %s27, %s43
      %p45 = scmp.eq.s32.totalorder %s19, 0
      %p46 = por %p44, %p45
      %s48 = sadd.s32 %s47, 1
      %p51 = scmp.eq.s32.totalorder %s13, 1
      %p52 = scmp.ne.s32.totalorder %s47, %s49
      %p53 = scmp.eq.s32.totalorder %s13, 0
      %p54 = por %p52, %p53
      %p55 = scmp.ne.s32.totalorder %s47, %s49
      %p56 = scmp.eq.s32.totalorder %s18, 1
      %p57 = por %p55, %p56
      %p58 = scmp.ne.s32.totalorder %s49, %s50
      %p59 = scmp.eq.s32.totalorder %s18, 0
      %p60 = por %p58, %p59
      %p61 = scmp.ne.s32.totalorder %s49, %s50
      %p62 = scmp.eq.s32.totalorder %s19, 1
      %p63 = por %p61, %p62
      %p65 = scmp.ne.s32.totalorder %s50, %s64
      %p66 = scmp.eq.s32.totalorder %s19, 0
      %p67 = por %p65, %p66
      %s69 = sadd.s32 %s68, 1
      %p72 = scmp.eq.s32.totalorder %s13, 1
      %p73 = scmp.ne.s32.totalorder %s68, %s70
      %p74 = scmp.eq.s32.totalorder %s13, 0
      %p75 = por %p73, %p74
      %p76 = scmp.ne.s32.totalorder %s68, %s70
      %p77 = scmp.eq.s32.totalorder %s18, 1
      %p78 = por %p76, %p77
      %p79 = scmp.ne.s32.totalorder %s70, %s71
      %p80 = scmp.eq.s32.totalorder %s18, 0
      %p81 = por %p79, %p80
      %p82 = scmp.ne.s32.totalorder %s70, %s71
      %p83 = scmp.eq.s32.totalorder %s19, 1
      %p84 = por %p82, %p83
      %p86 = scmp.ne.s32.totalorder %s71, %s85
      %p87 = scmp.eq.s32.totalorder %s19, 0
      %p88 = por %p86, %p87
      %s90 = sadd.s32 %s89, 1
      %p93 = scmp.eq.s32.totalorder %s13, 1
      %p94 = scmp.ne.s32.totalorder %s89, %s91
      %p95 = scmp.eq.s32.totalorder %s13, 0
      %p96 = por %p94, %p95
      %p97 = scmp.ne.s32.totalorder %s89, %s91
      %p98 = scmp.eq.s32.totalorder %s18, 1
      %p99 = por %p97, %p98
      %p100 = scmp.ne.s32.totalorder %s91, %s92
      %p101 = scmp.eq.s32.totalorder %s18, 0
      %p102 = por %p100, %p101
      %p103 = scmp.ne.s32.totalorder %s91, %s92
      %p104 = scmp.eq.s32.totalorder %s19, 1
      %p105 = por %p103, %p104
      %p107 = scmp.ne.s32.totalorder %s92, %s106
      %p108 = scmp.eq.s32.totalorder %s19, 0
      %p109 = por %p107, %p108
      %s110 = ssub.s32 %s13, %s20
      %p111 = scmp.eq.s32.totalorder %s110, 0
      %s113 = sadd.s32 %s112, 1
      %s114 = scalar_select %p111, %s112, %s113
      %p117 = pneg %p111
      %p118 = scmp.eq.s32.totalorder %s13, 1
      %p119 = por %p117, %p118
      %p120 = scmp.ne.s32.totalorder %s112, %s115
      %p121 = scmp.eq.s32.totalorder %s13, 0
      %p122 = por %p120, %p121
      %p123 = scmp.ne.s32.totalorder %s112, %s115
      %p124 = scmp.eq.s32.totalorder %s18, 1
      %p125 = por %p123, %p124
      %p126 = scmp.ne.s32.totalorder %s115, %s116
      %p127 = scmp.eq.s32.totalorder %s18, 0
      %p128 = por %p126, %p127
      %p129 = scmp.ne.s32.totalorder %s115, %s116
      %p130 = scmp.eq.s32.totalorder %s19, 1
      %p131 = por %p129, %p130
      %p133 = scmp.ne.s32.totalorder %s116, %s132
      %p134 = scmp.eq.s32.totalorder %s19, 0
      %p135 = por %p133, %p134
      %p136 = scmp.le.s32.totalorder 1, %s13
      %p137 = scmp.lt.s32.totalorder %s13, 3
      %p138 = pnand %p136, %p137
      %p139 = pneg %p138
      // Predicated region
      $region9: #{tpu_custom_call.1} parent=5 // pred_check
        _
      $region10: #{tpu_custom_call.1} parent=5 // pred_check_branch
        %141 = sbr.rel (%p138) target = $region12
      $region11: #{tpu_custom_call.1} parent=5 // pred_region
        %s142 = ssub.s32 %s13, 1
        // Predicated region
        $region13: #{tpu_custom_call.1} parent=11 // pred_check
          %p143 = pneg %p60
        $region14: #{tpu_custom_call.1} parent=11 // pred_check_branch
          %145 = sbr.rel (%p143) target = $region16
        $region15: #{tpu_custom_call.1} parent=11 // pred_region
          _
        $region16: #{tpu_custom_call.1} parent=11 // pred_fallthru
          _
        // Predicated region
        $region17: #{tpu_custom_call.1} parent=11 // pred_check
          %p146 = pneg %p81
        $region18: #{tpu_custom_call.1} parent=11 // pred_check_branch
          %148 = sbr.rel (%p146) target = $region20
        $region19: #{tpu_custom_call.1} parent=11 // pred_region
          _
        $region20: #{tpu_custom_call.1} parent=11 // pred_fallthru
          _
        // Predicated region
        $region21: #{tpu_custom_call.1} parent=11 // pred_check
          %p149 = pneg %p102
        $region22: #{tpu_custom_call.1} parent=11 // pred_check_branch
          %151 = sbr.rel (%p149) target = $region24
        $region23: #{tpu_custom_call.1} parent=11 // pred_region
          _
        $region24: #{tpu_custom_call.1} parent=11 // pred_fallthru
          _
      $region12: #{tpu_custom_call.1} parent=5 // pred_fallthru
        _
      %p152 = scmp.lt.s32.totalorder %s13, 2
      // Predicated region
      $region25: #{tpu_custom_call.1} parent=5 // pred_check
        %p153 = pneg %p152
      $region26: #{tpu_custom_call.1} parent=5 // pred_check_branch
        %155 = sbr.rel (%p153) target = $region28
      $region27: #{tpu_custom_call.1} parent=5 // pred_region
        // Predicated region
        $region29: #{tpu_custom_call.1} parent=27 // pred_check
          %p156 = pneg %p33
        $region30: #{tpu_custom_call.1} parent=27 // pred_check_branch
          %158 = sbr.rel (%p156) target = $region32
        $region31: #{tpu_custom_call.1} parent=27 // pred_region
          %p159 = scmp.lt.s32.totalorder %s13, 1
          %s160 = scalar_select %p159, %s13, 1
          %s161 = smul.addr %s160, 4
          %s162 = smul.addr %s161, 8
          %s163 = scalar_lea.vmem %s0, %s162
        $region32: #{tpu_custom_call.1} parent=27 // pred_fallthru
          _
      $region28: #{tpu_custom_call.1} parent=5 // pred_fallthru
        _
      %p164 = scmp.le.s32.totalorder 1, %s13
      %p165 = scmp.lt.s32.totalorder %s13, 3
      %p166 = pnand %p164, %p165
      %p167 = pneg %p166
      // Predicated region
      $region33: #{tpu_custom_call.1} parent=5 // pred_check
        _
      $region34: #{tpu_custom_call.1} parent=5 // pred_check_branch
        %169 = sbr.rel (%p166) target = $region36
      $region35: #{tpu_custom_call.1} parent=5 // pred_region
        %s170 = ssub.s32 %s13, 1
        %p171 = scmp.lt.s32.totalorder %s18, 1
        %s172 = scalar_select %p171, %s18, 1
        %s173 = smul.addr %s172, 4
        %s174 = smul.addr %s173, 8
        %s175 = scalar_lea.vmem %s0, %s174
        %p176 = pneg %p39
        %p177 = pneg %p36
        %p178 = pneg %p60
        %p179 = pneg %p57
        %p180 = pneg %p81
        %p181 = pneg %p78
        %p182 = pneg %p102
        %p183 = pneg %p99
        %p184 = pneg %p128
        %p185 = pneg %p125
        %s186 = sand.u32 %s115, 1
        %s187 = scalar_lea.sflag [#allocation3], %s186
        %s188 = sand.u32 %s115, 1
        %s189 = smul.addr %s188, 32
        %s190 = scalar_lea.vmem [#allocation2], %s189
        %p191 = scmp.lt.s32.totalorder %s18, 1
        %s192 = scalar_select %p191, %s18, 1
        %s193 = smul.addr %s192, 4
        %s194 = smul.addr %s193, 8
        %s195 = scalar_lea.vmem %s0, %s194
        %v196 = vld [vmem:[%s195] sm:$0xff]
        %v197 = vld [vmem:[%s195 + $0x8] sm:$0xff]
        %v198 = vld [vmem:[%s195 + $0x10] sm:$0xff]
        %v199 = vld [vmem:[%s195 + $0x18] sm:$0xff]
        %v200 = vld [vmem:[%s1] sm:$0xff]
        %v201 = vld [vmem:[%s1 + $0x8] sm:$0xff]
        %v202 = vld [vmem:[%s1 + $0x10] sm:$0xff]
        %v203 = vld [vmem:[%s1 + $0x18] sm:$0xff]
        %v204 = vld [vmem:[%s3] sm:$0xff]
        %v205 = vld [vmem:[%s3 + $0x8] sm:$0xff]
        %v206 = vld [vmem:[%s3 + $0x10] sm:$0xff]
        %v207 = vld [vmem:[%s3 + $0x18] sm:$0xff]
        %209 = vset.pattern.permute.xlu0 0
        %210 = vperm.xlu0 %209, %v204
        %v211 = vpop.permute.xlu0 %210
        %214 = vset.pattern.permute.xlu0 0
        %215 = vperm.xlu0 %214, %v205
        %v216 = vpop.permute.xlu0 %215
        %219 = vset.pattern.permute.xlu0 0
        %220 = vperm.xlu0 %219, %v206
        %v221 = vpop.permute.xlu0 %220
        %224 = vset.pattern.permute.xlu0 0
        %225 = vperm.xlu0 %224, %v207
        %v226 = vpop.permute.xlu0 %225
        %vm228 = vcmask 261120
        %v230 = vsel %vm228, %v200, 0
        %v233 = vsel %vm228, %v201, 0
        %v236 = vsel %vm228, %v202, 0
        %v239 = vsel %vm228, %v203, 0
        %241 = vmatpush.msra.mxu0 0.0
        %242 = vmatpush.msra.mxu0 0.0
        %243 = vmatpush.msra.mxu0 0.0
        %244 = vmatpush.msra.mxu0 0.0
        %245 = vmatpush.msra.mxu0 0.0
        %246 = vmatpush.msra.mxu0 0.0
        %247 = vmatpush.msra.mxu0 0.0
        %248 = vmatpush.msra.mxu0 0.0
        %249 = vmatpush.msra.mxu0 0.0
        %250 = vmatpush.msra.mxu0 0.0
        %251 = vmatpush.msra.mxu0 0.0
        %252 = vmatpush.msra.mxu0 0.0
        %253 = vmatpush.msra.mxu0 %v199
        %254 = vmatpush.msra.mxu0 %v198
        %255 = vmatpush.msra.mxu0 %v197
        %256 = vmatpush.msra.mxu0 %v196
        %257 = vmatmul.f32.gmra.mxu0 %v230
        %v258 = vpop.f32.mrf.mxu0
        %v259 = vadd.f32 %v211, %v258
        %260 = vmatmul.f32.gmra.mxu0 %v233
        %v261 = vpop.f32.mrf.mxu0
        %v262 = vadd.f32 %v216, %v261
        %263 = vmatmul.f32.gmra.mxu0 %v236
        %v264 = vpop.f32.mrf.mxu0
        %v265 = vadd.f32 %v221, %v264
        %266 = vmatmul.f32.gmra.mxu0 %v239
        %v267 = vpop.f32.mrf.mxu0
        %v268 = vadd.f32 %v226, %v267
        %269 = vdwg.mxu0
        %v270 = vmax.f32 %v259, 0.0
        %v271 = vmax.f32 %v262, 0.0
        %v272 = vmax.f32 %v265, 0.0
        %v273 = vmax.f32 %v268, 0.0
        %v274 = vld [vmem:[%s3 + $0x20] sm:$0xff]
        %v275 = vld [vmem:[%s3 + $0x28] sm:$0xff]
        %v276 = vld [vmem:[%s3 + $0x30] sm:$0xff]
        %v277 = vld [vmem:[%s3 + $0x38] sm:$0xff]
        %279 = vset.pattern.permute.xlu0 0
        %280 = vperm.xlu0 %279, %v274
        %v281 = vpop.permute.xlu0 %280
        %284 = vset.pattern.permute.xlu0 0
        %285 = vperm.xlu0 %284, %v275
        %v286 = vpop.permute.xlu0 %285
        %289 = vset.pattern.permute.xlu0 0
        %290 = vperm.xlu0 %289, %v276
        %v291 = vpop.permute.xlu0 %290
        %294 = vset.pattern.permute.xlu0 0
        %295 = vperm.xlu0 %294, %v277
        %v296 = vpop.permute.xlu0 %295
        %v298 = vmul.f32 %v270, %v281
        %v299 = vmul.f32 %v271, %v286
        %v300 = vmul.f32 %v272, %v291
        %v301 = vmul.f32 %v273, %v296
        %v302 = vld [vmem:[%s3 + $0x40] sm:$0xff]
        %v303 = vld [vmem:[%s3 + $0x48] sm:$0xff]
        %v304 = vld [vmem:[%s3 + $0x50] sm:$0xff]
        %v305 = vld [vmem:[%s3 + $0x58] sm:$0xff]
        %307 = vset.pattern.permute.xlu0 0
        %308 = vperm.xlu0 %307, %v302
        %v309 = vpop.permute.xlu0 %308
        %312 = vset.pattern.permute.xlu0 0
        %313 = vperm.xlu0 %312, %v303
        %v314 = vpop.permute.xlu0 %313
        %317 = vset.pattern.permute.xlu0 0
        %318 = vperm.xlu0 %317, %v304
        %v319 = vpop.permute.xlu0 %318
        %322 = vset.pattern.permute.xlu0 0
        %323 = vperm.xlu0 %322, %v305
        %v324 = vpop.permute.xlu0 %323
        %v326 = vadd.f32 %v298, %v309
        %v327 = vadd.f32 %v299, %v314
        %v328 = vadd.f32 %v300, %v319
        %v329 = vadd.f32 %v301, %v324
        %v330 = vlaneseq
        %v331 = vand.u32 %v330, 127
        %vm332 = vcmp.ge.s32.totalorder %v331, 2
        %vm333 = vcmp.lt.s32.totalorder %v331, 30
        %335 = vrot.lane.b32.xlu0 %v326, 2
        %v336 = vpop.permute.xlu0 %335
        %vm338 = vcmask 15360
        %v339 = vsel %vm338, 0.0, %v336
        %v340 = vsel %vm332, 1, 0
        %vm341 = vcmp.eq.s32.totalorder %v340, 1
        %v342 = vsel %vm341, %v339, 0.0
        %343 = vrot.lane.b32.xlu0 %v326, 126
        %v344 = vpop.permute.xlu0 %343
        %vm346 = vcmask 1031168
        %v347 = vsel %vm346, %v344, 0.0
        %v348 = vsel %vm333, 1, 0
        %vm349 = vcmp.eq.s32.totalorder %v348, 1
        %v350 = vsel %vm349, %v347, 0.0
        %v351 = vld [vmem:[%s1 + $0xc0] sm:$0xff]
        %v352 = vld [vmem:[%s3 + $0x60] sm:$0xff]
        %354 = vset.pattern.permute.xlu0 0
        %355 = vperm.xlu0 %354, %v352
        %v356 = vpop.permute.xlu0 %355
        %vm358 = vcmask 195584
        %v360 = vsel %vm358, %v351, 0
        %362 = vmatpush.msra.mxu0 0.0
        %363 = vmatpush.msra.mxu0 0.0
        %364 = vmatpush.msra.mxu0 0.0
        %365 = vmatpush.msra.mxu0 0.0
        %366 = vmatpush.msra.mxu0 0.0
        %367 = vmatpush.msra.mxu0 0.0
        %368 = vmatpush.msra.mxu0 0.0
        %369 = vmatpush.msra.mxu0 0.0
        %370 = vmatpush.msra.mxu0 0.0
        %371 = vmatpush.msra.mxu0 0.0
        %372 = vmatpush.msra.mxu0 0.0
        %373 = vmatpush.msra.mxu0 0.0
        %374 = vmatpush.msra.mxu0 0.0
        %375 = vmatpush.msra.mxu0 %v350
        %376 = vmatpush.msra.mxu0 %v326
        %377 = vmatpush.msra.mxu0 %v342
        %378 = vmatmul.f32.gmra.mxu0 %v360
        %v379 = vpop.f32.mrf.mxu0
        %v380 = vadd.f32 %v356, %v379
        %381 = vdwg.mxu0
        %v382 = vmax.f32 %v380, 0.0
        %v383 = vld [vmem:[%s3 + $0x78] sm:$0xff]
        %385 = vset.pattern.permute.xlu0 0
        %386 = vperm.xlu0 %385, %v383
        %v387 = vpop.permute.xlu0 %386
        %v389 = vmul.f32 %v382, %v387
        %v390 = vld [vmem:[%s3 + $0x90] sm:$0xff]
        %392 = vset.pattern.permute.xlu0 0
        %393 = vperm.xlu0 %392, %v390
        %v394 = vpop.permute.xlu0 %393
        %v396 = vadd.f32 %v389, %v394
        %v397 = vadd.f32 %v396, %v327
        %399 = vrot.lane.b32.xlu0 %v397, 2
        %v400 = vpop.permute.xlu0 %399
        %v402 = vsel %vm338, 0.0, %v400
        %v403 = vsel %vm341, %v402, 0.0
        %404 = vrot.lane.b32.xlu0 %v397, 126
        %v405 = vpop.permute.xlu0 %404
        %v407 = vsel %vm346, %v405, 0.0
        %v408 = vsel %vm349, %v407, 0.0
        %v409 = vld [vmem:[%s1 + $0xc8] sm:$0xff]
        %v410 = vld [vmem:[%s3 + $0x68] sm:$0xff]
        %412 = vset.pattern.permute.xlu0 0
        %413 = vperm.xlu0 %412, %v410
        %v414 = vpop.permute.xlu0 %413
        %v417 = vsel %vm358, %v409, 0
        %419 = vmatpush.msra.mxu0 0.0
        %420 = vmatpush.msra.mxu0 0.0
        %421 = vmatpush.msra.mxu0 0.0
        %422 = vmatpush.msra.mxu0 0.0
        %423 = vmatpush.msra.mxu0 0.0
        %424 = vmatpush.msra.mxu0 0.0
        %425 = vmatpush.msra.mxu0 0.0
        %426 = vmatpush.msra.mxu0 0.0
        %427 = vmatpush.msra.mxu0 0.0
        %428 = vmatpush.msra.mxu0 0.0
        %429 = vmatpush.msra.mxu0 0.0
        %430 = vmatpush.msra.mxu0 0.0
        %431 = vmatpush.msra.mxu0 0.0
        %432 = vmatpush.msra.mxu0 %v408
        %433 = vmatpush.msra.mxu0 %v397
        %434 = vmatpush.msra.mxu0 %v403
        %435 = vmatmul.f32.gmra.mxu0 %v417
        %v436 = vpop.f32.mrf.mxu0
        %v437 = vadd.f32 %v414, %v436
        %438 = vdwg.mxu0
        %v439 = vmax.f32 %v437, 0.0
        %v440 = vld [vmem:[%s3 + $0x80] sm:$0xff]
        %442 = vset.pattern.permute.xlu0 0
        %443 = vperm.xlu0 %442, %v440
        %v444 = vpop.permute.xlu0 %443
        %v446 = vmul.f32 %v439, %v444
        %v447 = vld [vmem:[%s3 + $0x98] sm:$0xff]
        %449 = vset.pattern.permute.xlu0 0
        %450 = vperm.xlu0 %449, %v447
        %v451 = vpop.permute.xlu0 %450
        %v453 = vadd.f32 %v446, %v451
        %v454 = vadd.f32 %v453, %v328
        %456 = vrot.lane.b32.xlu0 %v454, 2
        %v457 = vpop.permute.xlu0 %456
        %v459 = vsel %vm338, 0.0, %v457
        %v460 = vsel %vm341, %v459, 0.0
        %461 = vrot.lane.b32.xlu0 %v454, 126
        %v462 = vpop.permute.xlu0 %461
        %v464 = vsel %vm346, %v462, 0.0
        %v465 = vsel %vm349, %v464, 0.0
        %v466 = vld [vmem:[%s1 + $0xd0] sm:$0xff]
        %v467 = vld [vmem:[%s3 + $0x70] sm:$0xff]
        %469 = vset.pattern.permute.xlu0 0
        %470 = vperm.xlu0 %469, %v467
        %v471 = vpop.permute.xlu0 %470
        %v474 = vsel %vm358, %v466, 0
        %476 = vmatpush.msra.mxu0 0.0
        %477 = vmatpush.msra.mxu0 0.0
        %478 = vmatpush.msra.mxu0 0.0
        %479 = vmatpush.msra.mxu0 0.0
        %480 = vmatpush.msra.mxu0 0.0
        %481 = vmatpush.msra.mxu0 0.0
        %482 = vmatpush.msra.mxu0 0.0
        %483 = vmatpush.msra.mxu0 0.0
        %484 = vmatpush.msra.mxu0 0.0
        %485 = vmatpush.msra.mxu0 0.0
        %486 = vmatpush.msra.mxu0 0.0
        %487 = vmatpush.msra.mxu0 0.0
        %488 = vmatpush.msra.mxu0 0.0
        %489 = vmatpush.msra.mxu0 %v465
        %490 = vmatpush.msra.mxu0 %v454
        %491 = vmatpush.msra.mxu0 %v460
        %492 = vmatmul.f32.gmra.mxu0 %v474
        %v493 = vpop.f32.mrf.mxu0
        %v494 = vadd.f32 %v471, %v493
        %495 = vdwg.mxu0
        %v496 = vmax.f32 %v494, 0.0
        %v497 = vld [vmem:[%s3 + $0x88] sm:$0xff]
        %499 = vset.pattern.permute.xlu0 0
        %500 = vperm.xlu0 %499, %v497
        %v501 = vpop.permute.xlu0 %500
        %v503 = vmul.f32 %v496, %v501
        %v504 = vld [vmem:[%s3 + $0xa0] sm:$0xff]
        %506 = vset.pattern.permute.xlu0 0
        %507 = vperm.xlu0 %506, %v504
        %v508 = vpop.permute.xlu0 %507
        %v510 = vadd.f32 %v503, %v508
        %v511 = vld [vmem:[%s1 + $0x20] sm:$0xff]
        %v512 = vld [vmem:[%s1 + $0x28] sm:$0xff]
        %v513 = vld [vmem:[%s1 + $0x30] sm:$0xff]
        %v514 = vld [vmem:[%s1 + $0x38] sm:$0xff]
        %v515 = vld [vmem:[%s3 + $0xa8] sm:$0xff]
        %v516 = vld [vmem:[%s3 + $0xb0] sm:$0xff]
        %v517 = vld [vmem:[%s3 + $0xb8] sm:$0xff]
        %v518 = vld [vmem:[%s3 + $0xc0] sm:$0xff]
        %520 = vset.pattern.permute.xlu0 0
        %521 = vperm.xlu0 %520, %v515
        %v522 = vpop.permute.xlu0 %521
        %525 = vset.pattern.permute.xlu0 0
        %526 = vperm.xlu0 %525, %v516
        %v527 = vpop.permute.xlu0 %526
        %530 = vset.pattern.permute.xlu0 0
        %531 = vperm.xlu0 %530, %v517
        %v532 = vpop.permute.xlu0 %531
        %535 = vset.pattern.permute.xlu0 0
        %536 = vperm.xlu0 %535, %v518
        %v537 = vpop.permute.xlu0 %536
        %v540 = vsel %vm228, %v511, 0
        %v543 = vsel %vm228, %v512, 0
        %v546 = vsel %vm228, %v513, 0
        %v549 = vsel %vm228, %v514, 0
        %551 = vmatpush.msra.mxu0 0.0
        %552 = vmatpush.msra.mxu0 0.0
        %553 = vmatpush.msra.mxu0 0.0
        %554 = vmatpush.msra.mxu0 0.0
        %555 = vmatpush.msra.mxu0 0.0
        %556 = vmatpush.msra.mxu0 0.0
        %557 = vmatpush.msra.mxu0 0.0
        %558 = vmatpush.msra.mxu0 0.0
        %559 = vmatpush.msra.mxu0 0.0
        %560 = vmatpush.msra.mxu0 0.0
        %561 = vmatpush.msra.mxu0 0.0
        %562 = vmatpush.msra.mxu0 0.0
        %563 = vmatpush.msra.mxu0 %v329
        %564 = vmatpush.msra.mxu0 %v510
        %565 = vmatpush.msra.mxu0 %v453
        %566 = vmatpush.msra.mxu0 %v396
        %567 = vmatmul.f32.gmra.mxu0 %v540
        %v568 = vpop.f32.mrf.mxu0
        %v569 = vadd.f32 %v522, %v568
        %570 = vmatmul.f32.gmra.mxu0 %v543
        %v571 = vpop.f32.mrf.mxu0
        %v572 = vadd.f32 %v527, %v571
        %573 = vmatmul.f32.gmra.mxu0 %v546
        %v574 = vpop.f32.mrf.mxu0
        %v575 = vadd.f32 %v532, %v574
        %576 = vmatmul.f32.gmra.mxu0 %v549
        %v577 = vpop.f32.mrf.mxu0
        %v578 = vadd.f32 %v537, %v577
        %579 = vdwg.mxu0
        %v580 = vmax.f32 %v569, 0.0
        %v581 = vmax.f32 %v572, 0.0
        %v582 = vmax.f32 %v575, 0.0
        %v583 = vmax.f32 %v578, 0.0
        %v584 = vld [vmem:[%s3 + $0xc8] sm:$0xff]
        %v585 = vld [vmem:[%s3 + $0xd0] sm:$0xff]
        %v586 = vld [vmem:[%s3 + $0xd8] sm:$0xff]
        %v587 = vld [vmem:[%s3 + $0xe0] sm:$0xff]
        %589 = vset.pattern.permute.xlu0 0
        %590 = vperm.xlu0 %589, %v584
        %v591 = vpop.permute.xlu0 %590
        %594 = vset.pattern.permute.xlu0 0
        %595 = vperm.xlu0 %594, %v585
        %v596 = vpop.permute.xlu0 %595
        %599 = vset.pattern.permute.xlu0 0
        %600 = vperm.xlu0 %599, %v586
        %v601 = vpop.permute.xlu0 %600
        %604 = vset.pattern.permute.xlu0 0
        %605 = vperm.xlu0 %604, %v587
        %v606 = vpop.permute.xlu0 %605
        %v608 = vmul.f32 %v580, %v591
        %v609 = vmul.f32 %v581, %v596
        %v610 = vmul.f32 %v582, %v601
        %v611 = vmul.f32 %v583, %v606
        %v612 = vld [vmem:[%s3 + $0xe8] sm:$0xff]
        %v613 = vld [vmem:[%s3 + $0xf0] sm:$0xff]
        %v614 = vld [vmem:[%s3 + $0xf8] sm:$0xff]
        %v615 = vld [vmem:[%s3 + $0x100] sm:$0xff]
        %617 = vset.pattern.permute.xlu0 0
        %618 = vperm.xlu0 %617, %v612
        %v619 = vpop.permute.xlu0 %618
        %622 = vset.pattern.permute.xlu0 0
        %623 = vperm.xlu0 %622, %v613
        %v624 = vpop.permute.xlu0 %623
        %627 = vset.pattern.permute.xlu0 0
        %628 = vperm.xlu0 %627, %v614
        %v629 = vpop.permute.xlu0 %628
        %632 = vset.pattern.permute.xlu0 0
        %633 = vperm.xlu0 %632, %v615
        %v634 = vpop.permute.xlu0 %633
        %v636 = vadd.f32 %v608, %v619
        %v637 = vadd.f32 %v609, %v624
        %v638 = vadd.f32 %v610, %v629
        %v639 = vadd.f32 %v611, %v634
        %v640 = vlaneseq
        %v641 = vshrl.u32 %v640, 7
        %v642 = vadd.s32 %v641, 8
        %v643 = vadd.s32 %v641, 16
        %v644 = vadd.s32 %v641, 24
        %v645 = vadd.s32 %v641, 32
        %v646 = vadd.s32 %v641, 40
        %v647 = vadd.s32 %v641, 48
        %v648 = vadd.s32 %v641, 56
        %v649 = vadd.s32 %v641, 64
        %v650 = vadd.s32 %v641, 72
        %v651 = vadd.s32 %v641, 80
        %v652 = vadd.s32 %v641, 88
        %v653 = vadd.s32 %v641, 96
        %v654 = vadd.s32 %v641, 104
        %v655 = vadd.s32 %v641, 112
        %v656 = vadd.s32 %v641, 120
        %vm657 = vcmp.lt.s32.totalorder %v641, 32
        %vm658 = vcmp.lt.s32.totalorder %v642, 32
        %vm659 = vcmp.lt.s32.totalorder %v643, 32
        %vm660 = vcmp.lt.s32.totalorder %v644, 32
        %vm661 = vcmp.lt.s32.totalorder %v645, 32
        %vm662 = vcmp.lt.s32.totalorder %v646, 32
        %vm663 = vcmp.lt.s32.totalorder %v647, 32
        %vm664 = vcmp.lt.s32.totalorder %v648, 32
        %vm665 = vcmp.lt.s32.totalorder %v649, 32
        %vm666 = vcmp.lt.s32.totalorder %v650, 32
        %vm667 = vcmp.lt.s32.totalorder %v651, 32
        %vm668 = vcmp.lt.s32.totalorder %v652, 32
        %vm669 = vcmp.lt.s32.totalorder %v653, 32
        %vm670 = vcmp.lt.s32.totalorder %v654, 32
        %vm671 = vcmp.lt.s32.totalorder %v655, 32
        %vm672 = vcmp.lt.s32.totalorder %v656, 32
        %v673 = vsel %vm657, 0.03125, 0.0
        %v674 = vsel %vm658, 0.03125, 0.0
        %v675 = vsel %vm659, 0.03125, 0.0
        %v676 = vsel %vm660, 0.03125, 0.0
        %v677 = vsel %vm661, 0.03125, 0.0
        %v678 = vsel %vm662, 0.03125, 0.0
        %v679 = vsel %vm663, 0.03125, 0.0
        %v680 = vsel %vm664, 0.03125, 0.0
        %v681 = vsel %vm665, 0.03125, 0.0
        %v682 = vsel %vm666, 0.03125, 0.0
        %v683 = vsel %vm667, 0.03125, 0.0
        %v684 = vsel %vm668, 0.03125, 0.0
        %v685 = vsel %vm669, 0.03125, 0.0
        %v686 = vsel %vm670, 0.03125, 0.0
        %v687 = vsel %vm671, 0.03125, 0.0
        %v688 = vsel %vm672, 0.03125, 0.0
        %689 = vmatpush.msra.mxu0 %v688
        %690 = vmatpush.msra.mxu0 %v687
        %691 = vmatpush.msra.mxu0 %v686
        %692 = vmatpush.msra.mxu0 %v685
        %693 = vmatpush.msra.mxu0 %v684
        %694 = vmatpush.msra.mxu0 %v683
        %695 = vmatpush.msra.mxu0 %v682
        %696 = vmatpush.msra.mxu0 %v681
        %697 = vmatpush.msra.mxu0 %v680
        %698 = vmatpush.msra.mxu0 %v679
        %699 = vmatpush.msra.mxu0 %v678
        %700 = vmatpush.msra.mxu0 %v677
        %701 = vmatpush.msra.mxu0 %v676
        %702 = vmatpush.msra.mxu0 %v675
        %703 = vmatpush.msra.mxu0 %v674
        %704 = vmatpush.msra.mxu0 %v673
        %705 = vmatmul.f32.gmra.mxu0 %v636
        %v706 = vpop.f32.mrf.mxu0
        %v707 = vadd.f32 0.0, %v706
        %708 = vmatmul.f32.gmra.mxu0 %v637
        %v709 = vpop.f32.mrf.mxu0
        %v710 = vadd.f32 0.0, %v709
        %711 = vmatmul.f32.gmra.mxu0 %v638
        %v712 = vpop.f32.mrf.mxu0
        %v713 = vadd.f32 0.0, %v712
        %714 = vmatmul.f32.gmra.mxu0 %v639
        %v715 = vpop.f32.mrf.mxu0
        %v716 = vadd.f32 0.0, %v715
        %717 = vdwg.mxu0
        %v718 = vld [vmem:[%s1 + $0x40] sm:$0xff]
        %v719 = vld [vmem:[%s1 + $0x48] sm:$0xff]
        %v720 = vld [vmem:[%s1 + $0x50] sm:$0xff]
        %v721 = vld [vmem:[%s1 + $0x58] sm:$0xff]
        %v722 = vld [vmem:[%s1 + $0x60] sm:$0xff]
        %v723 = vld [vmem:[%s1 + $0x68] sm:$0xff]
        %v724 = vld [vmem:[%s1 + $0x70] sm:$0xff]
        %v725 = vld [vmem:[%s1 + $0x78] sm:$0xff]
        %v726 = vld [vmem:[%s1 + $0x80] sm:$0xff]
        %v727 = vld [vmem:[%s1 + $0x88] sm:$0xff]
        %v728 = vld [vmem:[%s1 + $0x90] sm:$0xff]
        %v729 = vld [vmem:[%s1 + $0x98] sm:$0xff]
        %v730 = vld [vmem:[%s1 + $0xa0] sm:$0xff]
        %v731 = vld [vmem:[%s1 + $0xa8] sm:$0xff]
        %v732 = vld [vmem:[%s1 + $0xb0] sm:$0xff]
        %v733 = vld [vmem:[%s1 + $0xb8] sm:$0xff]
        %v734 = vld [vmem:[%s3 + $0x108] sm:$0xff]
        %v735 = vld [vmem:[%s3 + $0x110] sm:$0xff]
        %v736 = vld [vmem:[%s3 + $0x118] sm:$0xff]
        %v737 = vld [vmem:[%s3 + $0x120] sm:$0xff]
        %v738 = vld [vmem:[%s3 + $0x128] sm:$0xff]
        %v739 = vld [vmem:[%s3 + $0x130] sm:$0xff]
        %v740 = vld [vmem:[%s3 + $0x138] sm:$0xff]
        %v741 = vld [vmem:[%s3 + $0x140] sm:$0xff]
        %v742 = vld [vmem:[%s3 + $0x148] sm:$0xff]
        %v743 = vld [vmem:[%s3 + $0x150] sm:$0xff]
        %v744 = vld [vmem:[%s3 + $0x158] sm:$0xff]
        %v745 = vld [vmem:[%s3 + $0x160] sm:$0xff]
        %v746 = vld [vmem:[%s3 + $0x168] sm:$0xff]
        %v747 = vld [vmem:[%s3 + $0x170] sm:$0xff]
        %v748 = vld [vmem:[%s3 + $0x178] sm:$0xff]
        %v749 = vld [vmem:[%s3 + $0x180] sm:$0xff]
        %v751 = vsel %vm228, %v718, 0
        %v754 = vsel %vm228, %v719, 0
        %v757 = vsel %vm228, %v720, 0
        %v760 = vsel %vm228, %v721, 0
        %v763 = vsel %vm228, %v722, 0
        %v766 = vsel %vm228, %v723, 0
        %v769 = vsel %vm228, %v724, 0
        %v772 = vsel %vm228, %v725, 0
        %v775 = vsel %vm228, %v726, 0
        %v778 = vsel %vm228, %v727, 0
        %v781 = vsel %vm228, %v728, 0
        %v784 = vsel %vm228, %v729, 0
        %v787 = vsel %vm228, %v730, 0
        %v790 = vsel %vm228, %v731, 0
        %v793 = vsel %vm228, %v732, 0
        %v796 = vsel %vm228, %v733, 0
        %798 = vmatpush.msra.mxu0 0.0
        %799 = vmatpush.msra.mxu0 0.0
        %800 = vmatpush.msra.mxu0 0.0
        %801 = vmatpush.msra.mxu0 0.0
        %802 = vmatpush.msra.mxu0 0.0
        %803 = vmatpush.msra.mxu0 0.0
        %804 = vmatpush.msra.mxu0 0.0
        %805 = vmatpush.msra.mxu0 0.0
        %806 = vmatpush.msra.mxu0 0.0
        %807 = vmatpush.msra.mxu0 0.0
        %808 = vmatpush.msra.mxu0 0.0
        %809 = vmatpush.msra.mxu0 0.0
        %810 = vmatpush.msra.mxu0 %v716
        %811 = vmatpush.msra.mxu0 %v713
        %812 = vmatpush.msra.mxu0 %v710
        %813 = vmatpush.msra.mxu0 %v707
        %814 = vmatmul.f32.gmra.mxu0 %v751
        %v815 = vpop.f32.mrf.mxu0
        %v816 = vadd.f32 %v734, %v815
        %817 = vmatmul.f32.gmra.mxu0 %v754
        %v818 = vpop.f32.mrf.mxu0
        %v819 = vadd.f32 %v735, %v818
        %820 = vmatmul.f32.gmra.mxu0 %v757
        %v821 = vpop.f32.mrf.mxu0
        %v822 = vadd.f32 %v736, %v821
        %823 = vmatmul.f32.gmra.mxu0 %v760
        %v824 = vpop.f32.mrf.mxu0
        %v825 = vadd.f32 %v737, %v824
        %826 = vmatmul.f32.gmra.mxu0 %v763
        %v827 = vpop.f32.mrf.mxu0
        %v828 = vadd.f32 %v738, %v827
        %829 = vmatmul.f32.gmra.mxu0 %v766
        %v830 = vpop.f32.mrf.mxu0
        %v831 = vadd.f32 %v739, %v830
        %832 = vmatmul.f32.gmra.mxu0 %v769
        %v833 = vpop.f32.mrf.mxu0
        %v834 = vadd.f32 %v740, %v833
        %835 = vmatmul.f32.gmra.mxu0 %v772
        %v836 = vpop.f32.mrf.mxu0
        %v837 = vadd.f32 %v741, %v836
        %838 = vmatmul.f32.gmra.mxu0 %v775
        %v839 = vpop.f32.mrf.mxu0
        %v840 = vadd.f32 %v742, %v839
        %841 = vmatmul.f32.gmra.mxu0 %v778
        %v842 = vpop.f32.mrf.mxu0
        %v843 = vadd.f32 %v743, %v842
        %844 = vmatmul.f32.gmra.mxu0 %v781
        %v845 = vpop.f32.mrf.mxu0
        %v846 = vadd.f32 %v744, %v845
        %847 = vmatmul.f32.gmra.mxu0 %v784
        %v848 = vpop.f32.mrf.mxu0
        %v849 = vadd.f32 %v745, %v848
        %850 = vmatmul.f32.gmra.mxu0 %v787
        %v851 = vpop.f32.mrf.mxu0
        %v852 = vadd.f32 %v746, %v851
        %853 = vmatmul.f32.gmra.mxu0 %v790
        %v854 = vpop.f32.mrf.mxu0
        %v855 = vadd.f32 %v747, %v854
        %856 = vmatmul.f32.gmra.mxu0 %v793
        %v857 = vpop.f32.mrf.mxu0
        %v858 = vadd.f32 %v748, %v857
        %859 = vmatmul.f32.gmra.mxu0 %v796
        %v860 = vpop.f32.mrf.mxu0
        %v861 = vadd.f32 %v749, %v860
        %862 = vdwg.mxu0
        %v863 = vmax.f32 %v816, 0.0
        %v864 = vmax.f32 %v819, 0.0
        %v865 = vmax.f32 %v822, 0.0
        %v866 = vmax.f32 %v825, 0.0
        %v867 = vmax.f32 %v828, 0.0
        %v868 = vmax.f32 %v831, 0.0
        %v869 = vmax.f32 %v834, 0.0
        %v870 = vmax.f32 %v837, 0.0
        %v871 = vmax.f32 %v840, 0.0
        %v872 = vmax.f32 %v843, 0.0
        %v873 = vmax.f32 %v846, 0.0
        %v874 = vmax.f32 %v849, 0.0
        %v875 = vmax.f32 %v852, 0.0
        %v876 = vmax.f32 %v855, 0.0
        %v877 = vmax.f32 %v858, 0.0
        %v878 = vmax.f32 %v861, 0.0
        %v879 = vld [vmem:[%s2] sm:$0xff]
        %v880 = vld [vmem:[%s2 + $0x8] sm:$0xff]
        %v881 = vld [vmem:[%s2 + $0x10] sm:$0xff]
        %v882 = vld [vmem:[%s2 + $0x18] sm:$0xff]
        %v883 = vld [vmem:[%s3 + $0x188] sm:$0xff]
        %v884 = vld [vmem:[%s3 + $0x190] sm:$0xff]
        %v885 = vld [vmem:[%s3 + $0x198] sm:$0xff]
        %v886 = vld [vmem:[%s3 + $0x1a0] sm:$0xff]
        %887 = vmatpush.msra.mxu0 %v878
        %888 = vmatpush.msra.mxu0 %v877
        %889 = vmatpush.msra.mxu0 %v876
        %890 = vmatpush.msra.mxu0 %v875
        %891 = vmatpush.msra.mxu0 %v874
        %892 = vmatpush.msra.mxu0 %v873
        %893 = vmatpush.msra.mxu0 %v872
        %894 = vmatpush.msra.mxu0 %v871
        %895 = vmatpush.msra.mxu0 %v870
        %896 = vmatpush.msra.mxu0 %v869
        %897 = vmatpush.msra.mxu0 %v868
        %898 = vmatpush.msra.mxu0 %v867
        %899 = vmatpush.msra.mxu0 %v866
        %900 = vmatpush.msra.mxu0 %v865
        %901 = vmatpush.msra.mxu0 %v864
        %902 = vmatpush.msra.mxu0 %v863
        %903 = vmatmul.f32.gmra.mxu0 %v879
        %v904 = vpop.f32.mrf.mxu0
        %v905 = vadd.f32 %v883, %v904
        %906 = vmatmul.f32.gmra.mxu0 %v880
        %v907 = vpop.f32.mrf.mxu0
        %v908 = vadd.f32 %v884, %v907
        %909 = vmatmul.f32.gmra.mxu0 %v881
        %v910 = vpop.f32.mrf.mxu0
        %v911 = vadd.f32 %v885, %v910
        %912 = vmatmul.f32.gmra.mxu0 %v882
        %v913 = vpop.f32.mrf.mxu0
        %v914 = vadd.f32 %v886, %v913
        %915 = vdwg.mxu0
        %v916 = vsub.f32 0.0, %v905
        %v917 = vsub.f32 0.0, %v908
        %v918 = vsub.f32 0.0, %v911
        %v919 = vsub.f32 0.0, %v914
        %v920 = vmul.f32 %v916, 1.442695
        %v921 = vpow.pop %v920
        %v922 = vmul.f32 %v917, 1.442695
        %v923 = vpow.pop %v922
        %v924 = vmul.f32 %v918, 1.442695
        %v925 = vpow.pop %v924
        %v926 = vmul.f32 %v919, 1.442695
        %v927 = vpow.pop %v926
        %v928 = vadd.f32 %v921, 1.0
        %v929 = vadd.f32 %v923, 1.0
        %v930 = vadd.f32 %v925, 1.0
        %v931 = vadd.f32 %v927, 1.0
        %v932 = vrcp.pop %v928
        %v933 = vmul.f32 %v928, %v932
        %v934 = vsub.f32 1.0, %v933
        %v935 = vmul.f32 %v932, %v934
        %v936 = vadd.f32 %v932, %v935
        %vm937 = vweird.f32 %v928
        %vm938 = vweird.f32 %v932
        %vm939 = vmor %vm937, %vm938
        %v940 = vsel %vm939, %v932, %v936
        %v941 = vand.u32 2147483647, %v928
        %vm942 = vcmp.eq.f32.partialorder %v941, 8.507059e+37
        %v943 = vand.u32 %v928, 2147483648
        %v944 = vor.u32 1.1754944e-38, %v943
        %v945 = vsel %vm942, %v944, %v940
        %v946 = vrcp.pop %v929
        %v947 = vmul.f32 %v929, %v946
        %v948 = vsub.f32 1.0, %v947
        %v949 = vmul.f32 %v946, %v948
        %v950 = vadd.f32 %v946, %v949
        %vm951 = vweird.f32 %v929
        %vm952 = vweird.f32 %v946
        %vm953 = vmor %vm951, %vm952
        %v954 = vsel %vm953, %v946, %v950
        %v955 = vand.u32 2147483647, %v929
        %vm956 = vcmp.eq.f32.partialorder %v955, 8.507059e+37
        %v957 = vand.u32 %v929, 2147483648
        %v958 = vor.u32 1.1754944e-38, %v957
        %v959 = vsel %vm956, %v958, %v954
        %v960 = vrcp.pop %v930
        %v961 = vmul.f32 %v930, %v960
        %v962 = vsub.f32 1.0, %v961
        %v963 = vmul.f32 %v960, %v962
        %v964 = vadd.f32 %v960, %v963
        %vm965 = vweird.f32 %v930
        %vm966 = vweird.f32 %v960
        %vm967 = vmor %vm965, %vm966
        %v968 = vsel %vm967, %v960, %v964
        %v969 = vand.u32 2147483647, %v930
        %vm970 = vcmp.eq.f32.partialorder %v969, 8.507059e+37
        %v971 = vand.u32 %v930, 2147483648
        %v972 = vor.u32 1.1754944e-38, %v971
        %v973 = vsel %vm970, %v972, %v968
        %v974 = vrcp.pop %v931
        %v975 = vmul.f32 %v931, %v974
        %v976 = vsub.f32 1.0, %v975
        %v977 = vmul.f32 %v974, %v976
        %v978 = vadd.f32 %v974, %v977
        %vm979 = vweird.f32 %v931
        %vm980 = vweird.f32 %v974
        %vm981 = vmor %vm979, %vm980
        %v982 = vsel %vm981, %v974, %v978
        %v983 = vand.u32 2147483647, %v931
        %vm984 = vcmp.eq.f32.partialorder %v983, 8.507059e+37
        %v985 = vand.u32 %v931, 2147483648
        %v986 = vor.u32 1.1754944e-38, %v985
        %v987 = vsel %vm984, %v986, %v982
        %989 = vset.pattern.permute.xlu0 0
        %990 = vperm.xlu0 %989, %v945
        %v991 = vpop.permute.xlu0 %990
        %994 = vset.pattern.permute.xlu0 0
        %995 = vperm.xlu0 %994, %v959
        %v996 = vpop.permute.xlu0 %995
        %999 = vset.pattern.permute.xlu0 0
        %1000 = vperm.xlu0 %999, %v973
        %v1001 = vpop.permute.xlu0 %1000
        %1004 = vset.pattern.permute.xlu0 0
        %1005 = vperm.xlu0 %1004, %v987
        %v1006 = vpop.permute.xlu0 %1005
        %v1008 = vmul.f32 %v636, %v991
        %v1009 = vmul.f32 %v637, %v996
        %v1010 = vmul.f32 %v638, %v1001
        %v1011 = vmul.f32 %v639, %v1006
        %v1012 = vadd.f32 %v1008, %v196
        %v1013 = vadd.f32 %v1009, %v197
        %v1014 = vadd.f32 %v1010, %v198
        %v1015 = vadd.f32 %v1011, %v199
        %1016 = vst [vmem:[%s190] sm:$0xff] %v1012
        %1017 = vst [vmem:[%s190 + $0x8] sm:$0xff] %v1013
        %1018 = vst [vmem:[%s190 + $0x10] sm:$0xff] %v1014
        %1019 = vst [vmem:[%s190 + $0x18] sm:$0xff] %v1015
        %s1020 = sand.u32 %s115, 1
        %s1021 = scalar_lea.sflag [#allocation3], %s1020
        %s1022 = sand.u32 %s115, 1
        %s1023 = smul.addr %s1022, 32
        %s1024 = scalar_lea.vmem [#allocation2], %s1023
        // Predicated region
        $region37: #{tpu_custom_call.1} parent=35 // pred_check
          %p1025 = pneg %p125
        $region38: #{tpu_custom_call.1} parent=35 // pred_check_branch
          %1027 = sbr.rel (%p1025) target = $region40
        $region39: #{tpu_custom_call.1} parent=35 // pred_region
          %1029 = vsyncadd %s1021, 0
          %s1030 = smul.addr %s18, 4
          %s1031 = smul.addr %s1030, 8
          %s1032 = scalar_lea.hbm %s4, %s1031
          %s1033 = sshll.u32 %s1024, 4
          %s1034 = int_to_ptr.vmem [resolvable:$true] %s1033
          %s1035 = sshll.u32 %s1032, 4
          %s1036 = int_to_ptr.hbm [resolvable:$true] %s1035
          %1041 = dma.vmem_to_hbm [thread:$0]  %s1034, 512, %s1036, %s1021, 128, 128, 8
        $region40: #{tpu_custom_call.1} parent=35 // pred_fallthru
          _
      $region36: #{tpu_custom_call.1} parent=5 // pred_fallthru
        _
      %p1042 = scmp.le.s32.totalorder 2, %s13
      // Predicated region
      $region41: #{tpu_custom_call.1} parent=5 // pred_check
        %p1043 = pneg %p1042
      $region42: #{tpu_custom_call.1} parent=5 // pred_check_branch
        %1045 = sbr.rel (%p1043) target = $region44
      $region43: #{tpu_custom_call.1} parent=5 // pred_region
        %s1046 = ssub.s32 %s13, 2
        // Predicated region
        $region45: #{tpu_custom_call.1} parent=43 // pred_check
          %p1047 = pneg %p131
        $region46: #{tpu_custom_call.1} parent=43 // pred_check_branch
          %1049 = sbr.rel (%p1047) target = $region48
        $region47: #{tpu_custom_call.1} parent=43 // pred_region
          %s1050 = sand.u32 %s116, 1
          %s1051 = scalar_lea.sflag [#allocation3], %s1050
          %s1052 = sand.u32 %s116, 1
          %s1053 = smul.addr %s1052, 32
          %s1054 = scalar_lea.vmem [#allocation2], %s1053
          %1056 = dma.done %s1051, 512
        $region48: #{tpu_custom_call.1} parent=43 // pred_fallthru
          _
      $region44: #{tpu_custom_call.1} parent=5 // pred_fallthru
        _
    $region6: #{tpu_custom_call.1} parent=1 // loop_footer
      %s17 = sadd.s32 1, %s13
    $region7: #{tpu_custom_call.1} parent=1 // loop_footer_branch
      %12 = sbr.rel target = $region3
    $region8: #{tpu_custom_call.1} parent=1 // loop_exit
      _
    %1057 = vsyncpa [#allocation3], 1
    %s1058 = scalar_lea.sflag [#allocation3], 1
    %1059 = vsyncpa %s1058, 1

</llo_original>
